<compile_context>
chip_gen: v5e
topology: v5e:2x2
jax: 0.10.0
libtpu: 0.0.40
codegen_flags: <defaults>
</compile_context>

<pallas_src>
import functools

import numpy as np
import jax
import jax.numpy as jnp
from jax import lax
from jax.experimental import pallas as pl
from jax.experimental.pallas import tpu as pltpu


def fnn3_kernel(x_ref, w1_ref, b1_ref, w2_ref, b2_ref, w3_ref, b3_ref,
                w4t_ref, b4_ref, o_ref, *, scale, approx_tanh):
    """One batch tile.  x_ref: (cols, D_in) native layout; internals CN (feat, cols)."""

    def scaled(h):
        return h * scale if scale != 1.0 else h     # n*a1 == 1.0 elided at trace time

    def act(h):
        if approx_tanh:
            # tanh(x) = 2/(1+exp(-2x)) - 1 ; exp + approx reciprocal both hit the EUP.
            return 2.0 * pl.reciprocal(1.0 + jnp.exp(-2.0 * h), approx=True) - 1.0
        return jnp.tanh(h)                          # lowers to the EUP tanh

    # Layer 1: fold the NC->CN transpose into the contraction:
    #   (H, D_in) . (cols, D_in)^T -> (H, cols)     (batch on the 128-lane axis)
    x_nc = x_ref[...].astype(w1_ref.dtype)
    h = lax.dot_general(w1_ref[...], x_nc, (((1,), (1,)), ((), ())),
                        preferred_element_type=jnp.float32)
    y = act(scaled(h + b1_ref[...]))                # (H, cols), f32

    # Layers 2, 3: lane-dense CN matmuls, f32 accumulate.
    h = jnp.dot(w2_ref[...], y.astype(w2_ref.dtype),
                preferred_element_type=jnp.float32)
    y = act(scaled(h + b2_ref[...]))
    h = jnp.dot(w3_ref[...], y.astype(w3_ref.dtype),
                preferred_element_type=jnp.float32)
    y = act(scaled(h + b3_ref[...]))

    # Layer 4: one small XLU transpose back to NC so the caller gets (N, D_out)
    # directly (no host-side transpose / slice afterwards).
    y_nc = y.T.astype(w4t_ref.dtype)                # (cols, H)
    out = jnp.dot(y_nc, w4t_ref[...], preferred_element_type=jnp.float32)
    o_ref[...] = scaled(out + b4_ref[...]).astype(o_ref.dtype)


def fnn3_forward(x, params, *, scale=1.0, block_rows=512, use_bf16=False,
                 approx_tanh=False):
    """x: (N, D_in) f32.  params: torch-native (out, in) weights, (out, 1) biases.

    Returns (N, D_out) f32, matching FNN3.forward:
        y = s*L4(tanh(s*L3(tanh(s*L2(tanh(s*L1(x)))))))  with s = n*a1.
    use_bf16: stream x / weights as bf16 (MXU-only; f32 accumulate / bias / tanh).
    """
    N, D_in = x.shape
    H = params["w1"].shape[0]
    D_out = params["w4"].shape[0]

    # Sublane-aligned batch tile.  Default 512 -> 2 blocks at N~1000 (one per
    # v7x TensorCore); on single-TC chips 1-2 fat blocks is the sweet spot.
    block_rows = int(max(8, min(pl.cdiv(block_rows, 8) * 8, pl.cdiv(N, 8) * 8)))
    n_blocks = pl.cdiv(N, block_rows)               # ragged last block: no jnp.pad

    w_dtype = jnp.bfloat16 if use_bf16 else jnp.float32
    w1 = params["w1"].astype(w_dtype)               # (H, D_in)
    w2 = params["w2"].astype(w_dtype)               # (H, H)
    w3 = params["w3"].astype(w_dtype)               # (H, H)
    w4t = params["w4"].T.astype(w_dtype)            # (H, D_out) — tiny one-time reshape
    b1, b2, b3 = params["b1"], params["b2"], params["b3"]   # (H, 1) f32, CN broadcast
    b4 = params["b4"].reshape(1, D_out)             # (1, D_out) f32, NC broadcast
    x_in = x.astype(w_dtype) if use_bf16 else x

    const = lambda i: (0, 0)                        # VMEM-resident operands

    # Advisory cost estimate for XLA's scheduler.
    n_eff = n_blocks * block_rows
    flops = 2 * n_eff * (D_in * H + 2 * H * H + H * D_out)
    transcendentals = 3 * n_eff * H
    bytes_accessed = int(
        x_in.size * x_in.dtype.itemsize + N * D_out * 4
        + sum(int(w.size) * w.dtype.itemsize for w in (w1, w2, w3, w4t))
        + sum(int(b.size) * 4 for b in (b1, b2, b3, b4)))

    kernel = functools.partial(fnn3_kernel, scale=scale, approx_tanh=approx_tanh)

    return pl.pallas_call(
        kernel,
        out_shape=jax.ShapeDtypeStruct((N, D_out), jnp.float32),
        grid_spec=pltpu.PrefetchScalarGridSpec(
            num_scalar_prefetch=0,
            grid=(n_blocks,),                       # batch axis only
            in_specs=[
                pl.BlockSpec((block_rows, D_in), lambda i: (i, 0)),  # x, native layout
                pl.BlockSpec((H, D_in), const),                      # w1 (out, in)
                pl.BlockSpec((H, 1), const),                         # b1
                pl.BlockSpec((H, H), const),                         # w2
                pl.BlockSpec((H, 1), const),                         # b2
                pl.BlockSpec((H, H), const),                         # w3
                pl.BlockSpec((H, 1), const),                         # b3
                pl.BlockSpec((H, D_out), const),                     # w4^T (in, out)
                pl.BlockSpec((1, D_out), const),                     # b4 (row)
            ],
            out_specs=pl.BlockSpec((block_rows, D_out), lambda i: (i, 0)),
        ),
        compiler_params=pltpu.CompilerParams(
            dimension_semantics=("parallel",)),     # v7x: blocks shard across both TCs
        cost_estimate=pl.CostEstimate(
            flops=flops,
            transcendentals=transcendentals,
            bytes_accessed=bytes_accessed),
    )(x_in, w1, b1, w2, b2, w3, b3, w4t, b4)


def init_params(key, D_in, H, D_out):
    """Matches the torch.nn.init.normal_ calls in FNN3.__init__.
    Weights kept in torch-native (out_features, in_features) layout;
    biases stored as (out_features, 1)."""
    ks = jax.random.split(key, 8)

    def nrm(k, shape, std):
        return (std * jax.random.normal(k, shape)).astype(jnp.float32)

    return {
        "w1": nrm(ks[0], (H, D_in), np.sqrt(2.0 / (D_in + H))),
        "w2": nrm(ks[1], (H, H), np.sqrt(2.0 / (H + H))),
        "w3": nrm(ks[2], (H, H), np.sqrt(2.0 / (H + H))),
        "w4": nrm(ks[3], (D_out, H), np.sqrt(2.0 / (H + D_out))),
        "b1": nrm(ks[4], (H, 1), 1.0),
        "b2": nrm(ks[5], (H, 1), 1.0),
        "b3": nrm(ks[6], (H, 1), 1.0),
        "b4": nrm(ks[7], (D_out, 1), 1.0),
    }


def fnn3_ref(x, params, scale=1.0):
    """Pure-JAX reference in the original NC orientation."""
    y1 = jnp.tanh(scale * (x @ params["w1"].T + params["b1"].T))
    y2 = jnp.tanh(scale * (y1 @ params["w2"].T + params["b2"].T))
    y3 = jnp.tanh(scale * (y2 @ params["w3"].T + params["b3"].T))
    return scale * (y3 @ params["w4"].T + params["b4"].T)


if __name__ == "__main__":
    # Small shapes consistent with the pointwise PDE net; N deliberately NOT a
    # multiple of block_rows to exercise the ragged-last-block path.
    D_in, H, D_out = 4, 32, 4
    N = 1000

    key = jax.random.PRNGKey(0)
    k_x, k_p = jax.random.split(key)
    x = jax.random.normal(k_x, (N, D_in), dtype=jnp.float32)
    params = init_params(k_p, D_in, H, D_out)

    # n * a1 = (1 / 0.1) * 0.1 = 1.0  (elided inside the kernel at trace time)
    scale = float((1.0 / 0.1) * 0.1)
    y_ref = fnn3_ref(x, params, scale=scale)

    # f32 path: tight parity with the reference.
    y = jax.block_until_ready(fnn3_forward(x, params, scale=scale))
    np.testing.assert_allclose(np.asarray(y), np.asarray(y_ref),
                               rtol=1e-4, atol=1e-4)

    # bf16 streaming path (v6e / v7x default; legal on v5e too since only the
    # MXU sees bf16).  Per-layer bf16 casts compound, so tolerance is loosened.
    y16 = jax.block_until_ready(fnn3_forward(x, params, scale=scale, use_bf16=True))
    np.testing.assert_allclose(np.asarray(y16), np.asarray(y_ref),
                               rtol=5e-2, atol=5e-2)

    print("KERNEL_OK")
</pallas_src>

<mosaic_0001>
module attributes {stable_mosaic.version = 11 : i64} {
  func.func @fnn3_kernel(%arg0: i32, %arg1: memref<512x4xf32, #tpu.memory_space<vmem>>, %arg2: memref<32x4xf32, #tpu.memory_space<vmem>>, %arg3: memref<32x1xf32, #tpu.memory_space<vmem>>, %arg4: memref<32x32xf32, #tpu.memory_space<vmem>>, %arg5: memref<32x1xf32, #tpu.memory_space<vmem>>, %arg6: memref<32x32xf32, #tpu.memory_space<vmem>>, %arg7: memref<32x1xf32, #tpu.memory_space<vmem>>, %arg8: memref<32x4xf32, #tpu.memory_space<vmem>>, %arg9: memref<1x4xf32, #tpu.memory_space<vmem>>, %arg10: memref<512x4xf32, #tpu.memory_space<vmem>>) attributes {dimension_semantics = [#tpu.dimension_semantics<parallel>], iteration_bounds = array<i64: 2>, scalar_prefetch = 0 : i64, scratch_operands = 0 : i64, tpu.core_type = #tpu.core_type<tc>, window_params = [{transform_indices = @transform_0, window_bounds = array<i64: 512, 4>}, {pipeline_mode = #tpu.pipeline_mode<synchronous>, transform_indices = @transform_1, window_bounds = array<i64: 32, 4>}, {pipeline_mode = #tpu.pipeline_mode<synchronous>, transform_indices = @transform_2, window_bounds = array<i64: 32, 1>}, {pipeline_mode = #tpu.pipeline_mode<synchronous>, transform_indices = @transform_3, window_bounds = array<i64: 32, 32>}, {pipeline_mode = #tpu.pipeline_mode<synchronous>, transform_indices = @transform_4, window_bounds = array<i64: 32, 1>}, {pipeline_mode = #tpu.pipeline_mode<synchronous>, transform_indices = @transform_5, window_bounds = array<i64: 32, 32>}, {pipeline_mode = #tpu.pipeline_mode<synchronous>, transform_indices = @transform_6, window_bounds = array<i64: 32, 1>}, {pipeline_mode = #tpu.pipeline_mode<synchronous>, transform_indices = @transform_7, window_bounds = array<i64: 32, 4>}, {pipeline_mode = #tpu.pipeline_mode<synchronous>, transform_indices = @transform_8, window_bounds = array<i64: 1, 4>}, {transform_indices = @transform_9, window_bounds = array<i64: 512, 4>}]} {
    %c0 = arith.constant 0 : index
    %c0_0 = arith.constant 0 : index
    %0 = vector.load %arg1[%c0, %c0_0] : memref<512x4xf32, #tpu.memory_space<vmem>>, vector<512x4xf32>
    %c0_1 = arith.constant 0 : index
    %c0_2 = arith.constant 0 : index
    %1 = vector.load %arg2[%c0_1, %c0_2] : memref<32x4xf32, #tpu.memory_space<vmem>>, vector<32x4xf32>
    %cst = arith.constant dense<0.000000e+00> : vector<32x512xf32>
    %2 = tpu.matmul %1, %0, %cst {dimension_numbers = #tpu.dot_dimension_numbers<[1], [1], [0], [0], [0, 0, 1, 0], [], []>} : vector<32x4xf32>, vector<512x4xf32>, vector<32x512xf32> -> vector<32x512xf32>
    %c0_3 = arith.constant 0 : index
    %c0_4 = arith.constant 0 : index
    %3 = vector.load %arg3[%c0_3, %c0_4] : memref<32x1xf32, #tpu.memory_space<vmem>>, vector<32x1xf32>
    %4 = vector.broadcast %3 : vector<32x1xf32> to vector<32x512xf32>
    %5 = arith.addf %2, %4 : vector<32x512xf32>
    %6 = math.tanh %5 : vector<32x512xf32>
    %c0_5 = arith.constant 0 : index
    %c0_6 = arith.constant 0 : index
    %7 = vector.load %arg4[%c0_5, %c0_6] : memref<32x32xf32, #tpu.memory_space<vmem>>, vector<32x32xf32>
    %cst_7 = arith.constant dense<0.000000e+00> : vector<32x512xf32>
    %8 = tpu.matmul %7, %6, %cst_7 {dimension_numbers = #tpu.dot_dimension_numbers<[1], [0], [0], [1], [0, 0, 1, 1], [], []>} : vector<32x32xf32>, vector<32x512xf32>, vector<32x512xf32> -> vector<32x512xf32>
    %c0_8 = arith.constant 0 : index
    %c0_9 = arith.constant 0 : index
    %9 = vector.load %arg5[%c0_8, %c0_9] : memref<32x1xf32, #tpu.memory_space<vmem>>, vector<32x1xf32>
    %10 = vector.broadcast %9 : vector<32x1xf32> to vector<32x512xf32>
    %11 = arith.addf %8, %10 : vector<32x512xf32>
    %12 = math.tanh %11 : vector<32x512xf32>
    %c0_10 = arith.constant 0 : index
    %c0_11 = arith.constant 0 : index
    %13 = vector.load %arg6[%c0_10, %c0_11] : memref<32x32xf32, #tpu.memory_space<vmem>>, vector<32x32xf32>
    %cst_12 = arith.constant dense<0.000000e+00> : vector<32x512xf32>
    %14 = tpu.matmul %13, %12, %cst_12 {dimension_numbers = #tpu.dot_dimension_numbers<[1], [0], [0], [1], [0, 0, 1, 1], [], []>} : vector<32x32xf32>, vector<32x512xf32>, vector<32x512xf32> -> vector<32x512xf32>
    %c0_13 = arith.constant 0 : index
    %c0_14 = arith.constant 0 : index
    %15 = vector.load %arg7[%c0_13, %c0_14] : memref<32x1xf32, #tpu.memory_space<vmem>>, vector<32x1xf32>
    %16 = vector.broadcast %15 : vector<32x1xf32> to vector<32x512xf32>
    %17 = arith.addf %14, %16 : vector<32x512xf32>
    %18 = math.tanh %17 : vector<32x512xf32>
    %19 = tpu.transpose %18, [1, 0] : vector<32x512xf32> -> vector<512x32xf32>
    %c0_15 = arith.constant 0 : index
    %c0_16 = arith.constant 0 : index
    %20 = vector.load %arg8[%c0_15, %c0_16] : memref<32x4xf32, #tpu.memory_space<vmem>>, vector<32x4xf32>
    %cst_17 = arith.constant dense<0.000000e+00> : vector<512x4xf32>
    %21 = tpu.matmul %19, %20, %cst_17 {dimension_numbers = #tpu.dot_dimension_numbers<[1], [0], [0], [1], [0, 0, 1, 1], [], []>} : vector<512x32xf32>, vector<32x4xf32>, vector<512x4xf32> -> vector<512x4xf32>
    %c0_18 = arith.constant 0 : index
    %c0_19 = arith.constant 0 : index
    %22 = vector.load %arg9[%c0_18, %c0_19] : memref<1x4xf32, #tpu.memory_space<vmem>>, vector<1x4xf32>
    %23 = vector.broadcast %22 : vector<1x4xf32> to vector<512x4xf32>
    %24 = arith.addf %21, %23 : vector<512x4xf32>
    %c0_20 = arith.constant 0 : index
    %c0_21 = arith.constant 0 : index
    %25 = vector.load %arg10[%c0_20, %c0_21] : memref<512x4xf32, #tpu.memory_space<vmem>>, vector<512x4xf32>
    tpu.vector_store %arg10[%c0_20, %c0_21], %24 {strides = array<i32>} : memref<512x4xf32, #tpu.memory_space<vmem>>, vector<512x4xf32>,
    return
  }
  func.func @transform_0(%arg0: i32) -> (i32, i32) {
    %c0_i32 = arith.constant 0 : i32
    %c0_i32_0 = arith.constant 0 : i32
    return %arg0, %c0_i32 : i32, i32
  }
  func.func @transform_1(%arg0: i32) -> (i32, i32) {
    %c0_i32 = arith.constant 0 : i32
    %c0_i32_0 = arith.constant 0 : i32
    %c0_i32_1 = arith.constant 0 : i32
    return %c0_i32, %c0_i32_0 : i32, i32
  }
  func.func @transform_2(%arg0: i32) -> (i32, i32) {
    %c0_i32 = arith.constant 0 : i32
    %c0_i32_0 = arith.constant 0 : i32
    %c0_i32_1 = arith.constant 0 : i32
    return %c0_i32, %c0_i32_0 : i32, i32
  }
  func.func @transform_3(%arg0: i32) -> (i32, i32) {
    %c0_i32 = arith.constant 0 : i32
    %c0_i32_0 = arith.constant 0 : i32
    %c0_i32_1 = arith.constant 0 : i32
    return %c0_i32, %c0_i32_0 : i32, i32
  }
  func.func @transform_4(%arg0: i32) -> (i32, i32) {
    %c0_i32 = arith.constant 0 : i32
    %c0_i32_0 = arith.constant 0 : i32
    %c0_i32_1 = arith.constant 0 : i32
    return %c0_i32, %c0_i32_0 : i32, i32
  }
  func.func @transform_5(%arg0: i32) -> (i32, i32) {
    %c0_i32 = arith.constant 0 : i32
    %c0_i32_0 = arith.constant 0 : i32
    %c0_i32_1 = arith.constant 0 : i32
    return %c0_i32, %c0_i32_0 : i32, i32
  }
  func.func @transform_6(%arg0: i32) -> (i32, i32) {
    %c0_i32 = arith.constant 0 : i32
    %c0_i32_0 = arith.constant 0 : i32
    %c0_i32_1 = arith.constant 0 : i32
    return %c0_i32, %c0_i32_0 : i32, i32
  }
  func.func @transform_7(%arg0: i32) -> (i32, i32) {
    %c0_i32 = arith.constant 0 : i32
    %c0_i32_0 = arith.constant 0 : i32
    %c0_i32_1 = arith.constant 0 : i32
    return %c0_i32, %c0_i32_0 : i32, i32
  }
  func.func @transform_8(%arg0: i32) -> (i32, i32) {
    %c0_i32 = arith.constant 0 : i32
    %c0_i32_0 = arith.constant 0 : i32
    %c0_i32_1 = arith.constant 0 : i32
    return %c0_i32, %c0_i32_0 : i32, i32
  }
  func.func @transform_9(%arg0: i32) -> (i32, i32) {
    %c0_i32 = arith.constant 0 : i32
    %c0_i32_0 = arith.constant 0 : i32
    return %arg0, %c0_i32 : i32, i32
  }
}

</mosaic_0001>

<llo_original>
// kernel: tpu_custom_call.1
$region0: #{tpu_custom_call.1}
  #allocation0 [shape = 'u32[]', space=smem, size = 0x4, offset = 0x4, fixed_abs, tag = 'smem constant byte address 0x4 - core index']
  #allocation1 [shape = 'u32[72,128]{1,0:T(1,128)}', space=vmem, size = 0x9000, scoped, tag = 'internal scratch']
  %s0 = inlined_call_operand.vmem [shape: f32[1000,4], index: 0, kind: input, shape index: {}]
  %s1 = inlined_call_operand.vmem [shape: f32[32,4], index: 1, kind: input, shape index: {}]
  %s2 = inlined_call_operand.vmem [shape: f32[32,1], index: 2, kind: input, shape index: {}]
  %s3 = inlined_call_operand.vmem [shape: f32[32,32], index: 3, kind: input, shape index: {}]
  %s4 = inlined_call_operand.vmem [shape: f32[32,1], index: 4, kind: input, shape index: {}]
  %s5 = inlined_call_operand.vmem [shape: f32[32,32], index: 5, kind: input, shape index: {}]
  %s6 = inlined_call_operand.vmem [shape: f32[32,1], index: 6, kind: input, shape index: {}]
  %s7 = inlined_call_operand.vmem [shape: f32[32,4], index: 7, kind: input, shape index: {}]
  %s8 = inlined_call_operand.vmem [shape: f32[1,4], index: 8, kind: input, shape index: {}]
  %s9 = inlined_call_operand.vmem [shape: f32[1000,4], index: 9, kind: output, shape index: {}]
  %s10 = sld [smem:[#allocation0]]
  $region117: #{tpu_custom_call.1} parent=0
    _
  %s12 = ssub.s32 1, %s10
  %s13 = scalar_select 0, %s12, %s10
  $region1: #{tpu_custom_call.1} parent=0
    #allocation2 [shape = 'u8[524288]{0}', space=vmem, size = 0x80000, scoped, tag = 'output window, operand 0']
    loop: start=0, step=1, limit=4
    $region2: #{tpu_custom_call.1} parent=1 // loop_pre_header
      _
    $region3: #{tpu_custom_call.1} parent=1 // loop_header
      %s15 = sphi 0, %s19
      %p16 = scmp.ge.s32.totalorder %s15, 4
      %s25 = sphi 0, %s27
      %s28 = sphi 0, %s25
      %s29 = sphi 0, %s28
      %s45 = sphi 0, %s29
      %s49 = sphi 0, %s49
      %s51 = sphi 0, %s49
      %s52 = sphi 0, %s51
      %s66 = sphi 0, %s52
      %s70 = sphi 0, %s70
      %s72 = sphi 0, %s70
      %s73 = sphi 0, %s72
      %s87 = sphi 0, %s73
      %s91 = sphi 0, %s91
      %s93 = sphi 0, %s91
      %s94 = sphi 0, %s93
      %s108 = sphi 0, %s94
      %s112 = sphi 0, %s112
      %s114 = sphi 0, %s112
      %s115 = sphi 0, %s114
      %s129 = sphi 0, %s115
      %s133 = sphi 0, %s133
      %s135 = sphi 0, %s133
      %s136 = sphi 0, %s135
      %s150 = sphi 0, %s136
      %s154 = sphi 0, %s154
      %s156 = sphi 0, %s154
      %s157 = sphi 0, %s156
      %s171 = sphi 0, %s157
      %s175 = sphi 0, %s175
      %s177 = sphi 0, %s175
      %s178 = sphi 0, %s177
      %s192 = sphi 0, %s178
      %s196 = sphi 0, %s196
      %s198 = sphi 0, %s196
      %s199 = sphi 0, %s198
      %s213 = sphi 0, %s199
      %s219 = sphi 0, %s221
      %s222 = sphi 0, %s219
      %s223 = sphi 0, %s222
      %s239 = sphi 0, %s223
    $region4: #{tpu_custom_call.1} parent=1 // loop_header_branch
      %18 = sbr.rel (%p16) target = $region8
    $region5: #{tpu_custom_call.1} parent=1 // loop_body
      %s20 = ssub.s32 %s15, 1
      %s21 = ssub.s32 %s15, 2
      %s22 = sadd.s32 %s15, 1
      %s23 = ssub.s32 %s15, %s22
      %p24 = scmp.eq.s32.totalorder %s23, 0
      %s26 = sadd.s32 %s25, 1
      %s27 = scalar_select %p24, %s25, %s26
      %p30 = pneg %p24
      %p31 = scmp.eq.s32.totalorder %s15, 1
      %p32 = por %p30, %p31
      %p33 = scmp.ne.s32.totalorder %s25, %s28
      %p34 = scmp.eq.s32.totalorder %s15, 0
      %p35 = por %p33, %p34
      %p36 = scmp.ne.s32.totalorder %s25, %s28
      %p37 = scmp.eq.s32.totalorder %s20, 1
      %p38 = por %p36, %p37
      %p39 = scmp.ne.s32.totalorder %s28, %s29
      %p40 = scmp.eq.s32.totalorder %s20, 0
      %p41 = por %p39, %p40
      %p42 = scmp.ne.s32.totalorder %s28, %s29
      %p43 = scmp.eq.s32.totalorder %s21, 1
      %p44 = por %p42, %p43
      %p46 = scmp.ne.s32.totalorder %s29, %s45
      %p47 = scmp.eq.s32.totalorder %s21, 0
      %p48 = por %p46, %p47
      %s50 = sadd.s32 %s49, 1
      %p53 = scmp.eq.s32.totalorder %s15, 1
      %p54 = scmp.ne.s32.totalorder %s49, %s51
      %p55 = scmp.eq.s32.totalorder %s15, 0
      %p56 = por %p54, %p55
      %p57 = scmp.ne.s32.totalorder %s49, %s51
      %p58 = scmp.eq.s32.totalorder %s20, 1
      %p59 = por %p57, %p58
      %p60 = scmp.ne.s32.totalorder %s51, %s52
      %p61 = scmp.eq.s32.totalorder %s20, 0
      %p62 = por %p60, %p61
      %p63 = scmp.ne.s32.totalorder %s51, %s52
      %p64 = scmp.eq.s32.totalorder %s21, 1
      %p65 = por %p63, %p64
      %p67 = scmp.ne.s32.totalorder %s52, %s66
      %p68 = scmp.eq.s32.totalorder %s21, 0
      %p69 = por %p67, %p68
      %s71 = sadd.s32 %s70, 1
      %p74 = scmp.eq.s32.totalorder %s15, 1
      %p75 = scmp.ne.s32.totalorder %s70, %s72
      %p76 = scmp.eq.s32.totalorder %s15, 0
      %p77 = por %p75, %p76
      %p78 = scmp.ne.s32.totalorder %s70, %s72
      %p79 = scmp.eq.s32.totalorder %s20, 1
      %p80 = por %p78, %p79
      %p81 = scmp.ne.s32.totalorder %s72, %s73
      %p82 = scmp.eq.s32.totalorder %s20, 0
      %p83 = por %p81, %p82
      %p84 = scmp.ne.s32.totalorder %s72, %s73
      %p85 = scmp.eq.s32.totalorder %s21, 1
      %p86 = por %p84, %p85
      %p88 = scmp.ne.s32.totalorder %s73, %s87
      %p89 = scmp.eq.s32.totalorder %s21, 0
      %p90 = por %p88, %p89
      %s92 = sadd.s32 %s91, 1
      %p95 = scmp.eq.s32.totalorder %s15, 1
      %p96 = scmp.ne.s32.totalorder %s91, %s93
      %p97 = scmp.eq.s32.totalorder %s15, 0
      %p98 = por %p96, %p97
      %p99 = scmp.ne.s32.totalorder %s91, %s93
      %p100 = scmp.eq.s32.totalorder %s20, 1
      %p101 = por %p99, %p100
      %p102 = scmp.ne.s32.totalorder %s93, %s94
      %p103 = scmp.eq.s32.totalorder %s20, 0
      %p104 = por %p102, %p103
      %p105 = scmp.ne.s32.totalorder %s93, %s94
      %p106 = scmp.eq.s32.totalorder %s21, 1
      %p107 = por %p105, %p106
      %p109 = scmp.ne.s32.totalorder %s94, %s108
      %p110 = scmp.eq.s32.totalorder %s21, 0
      %p111 = por %p109, %p110
      %s113 = sadd.s32 %s112, 1
      %p116 = scmp.eq.s32.totalorder %s15, 1
      %p117 = scmp.ne.s32.totalorder %s112, %s114
      %p118 = scmp.eq.s32.totalorder %s15, 0
      %p119 = por %p117, %p118
      %p120 = scmp.ne.s32.totalorder %s112, %s114
      %p121 = scmp.eq.s32.totalorder %s20, 1
      %p122 = por %p120, %p121
      %p123 = scmp.ne.s32.totalorder %s114, %s115
      %p124 = scmp.eq.s32.totalorder %s20, 0
      %p125 = por %p123, %p124
      %p126 = scmp.ne.s32.totalorder %s114, %s115
      %p127 = scmp.eq.s32.totalorder %s21, 1
      %p128 = por %p126, %p127
      %p130 = scmp.ne.s32.totalorder %s115, %s129
      %p131 = scmp.eq.s32.totalorder %s21, 0
      %p132 = por %p130, %p131
      %s134 = sadd.s32 %s133, 1
      %p137 = scmp.eq.s32.totalorder %s15, 1
      %p138 = scmp.ne.s32.totalorder %s133, %s135
      %p139 = scmp.eq.s32.totalorder %s15, 0
      %p140 = por %p138, %p139
      %p141 = scmp.ne.s32.totalorder %s133, %s135
      %p142 = scmp.eq.s32.totalorder %s20, 1
      %p143 = por %p141, %p142
      %p144 = scmp.ne.s32.totalorder %s135, %s136
      %p145 = scmp.eq.s32.totalorder %s20, 0
      %p146 = por %p144, %p145
      %p147 = scmp.ne.s32.totalorder %s135, %s136
      %p148 = scmp.eq.s32.totalorder %s21, 1
      %p149 = por %p147, %p148
      %p151 = scmp.ne.s32.totalorder %s136, %s150
      %p152 = scmp.eq.s32.totalorder %s21, 0
      %p153 = por %p151, %p152
      %s155 = sadd.s32 %s154, 1
      %p158 = scmp.eq.s32.totalorder %s15, 1
      %p159 = scmp.ne.s32.totalorder %s154, %s156
      %p160 = scmp.eq.s32.totalorder %s15, 0
      %p161 = por %p159, %p160
      %p162 = scmp.ne.s32.totalorder %s154, %s156
      %p163 = scmp.eq.s32.totalorder %s20, 1
      %p164 = por %p162, %p163
      %p165 = scmp.ne.s32.totalorder %s156, %s157
      %p166 = scmp.eq.s32.totalorder %s20, 0
      %p167 = por %p165, %p166
      %p168 = scmp.ne.s32.totalorder %s156, %s157
      %p169 = scmp.eq.s32.totalorder %s21, 1
      %p170 = por %p168, %p169
      %p172 = scmp.ne.s32.totalorder %s157, %s171
      %p173 = scmp.eq.s32.totalorder %s21, 0
      %p174 = por %p172, %p173
      %s176 = sadd.s32 %s175, 1
      %p179 = scmp.eq.s32.totalorder %s15, 1
      %p180 = scmp.ne.s32.totalorder %s175, %s177
      %p181 = scmp.eq.s32.totalorder %s15, 0
      %p182 = por %p180, %p181
      %p183 = scmp.ne.s32.totalorder %s175, %s177
      %p184 = scmp.eq.s32.totalorder %s20, 1
      %p185 = por %p183, %p184
      %p186 = scmp.ne.s32.totalorder %s177, %s178
      %p187 = scmp.eq.s32.totalorder %s20, 0
      %p188 = por %p186, %p187
      %p189 = scmp.ne.s32.totalorder %s177, %s178
      %p190 = scmp.eq.s32.totalorder %s21, 1
      %p191 = por %p189, %p190
      %p193 = scmp.ne.s32.totalorder %s178, %s192
      %p194 = scmp.eq.s32.totalorder %s21, 0
      %p195 = por %p193, %p194
      %s197 = sadd.s32 %s196, 1
      %p200 = scmp.eq.s32.totalorder %s15, 1
      %p201 = scmp.ne.s32.totalorder %s196, %s198
      %p202 = scmp.eq.s32.totalorder %s15, 0
      %p203 = por %p201, %p202
      %p204 = scmp.ne.s32.totalorder %s196, %s198
      %p205 = scmp.eq.s32.totalorder %s20, 1
      %p206 = por %p204, %p205
      %p207 = scmp.ne.s32.totalorder %s198, %s199
      %p208 = scmp.eq.s32.totalorder %s20, 0
      %p209 = por %p207, %p208
      %p210 = scmp.ne.s32.totalorder %s198, %s199
      %p211 = scmp.eq.s32.totalorder %s21, 1
      %p212 = por %p210, %p211
      %p214 = scmp.ne.s32.totalorder %s199, %s213
      %p215 = scmp.eq.s32.totalorder %s21, 0
      %p216 = por %p214, %p215
      %s217 = ssub.s32 %s15, %s22
      %p218 = scmp.eq.s32.totalorder %s217, 0
      %s220 = sadd.s32 %s219, 1
      %s221 = scalar_select %p218, %s219, %s220
      %p224 = pneg %p218
      %p225 = scmp.eq.s32.totalorder %s15, 1
      %p226 = por %p224, %p225
      %p227 = scmp.ne.s32.totalorder %s219, %s222
      %p228 = scmp.eq.s32.totalorder %s15, 0
      %p229 = por %p227, %p228
      %p230 = scmp.ne.s32.totalorder %s219, %s222
      %p231 = scmp.eq.s32.totalorder %s20, 1
      %p232 = por %p230, %p231
      %p233 = scmp.ne.s32.totalorder %s222, %s223
      %p234 = scmp.eq.s32.totalorder %s20, 0
      %p235 = por %p233, %p234
      %p236 = scmp.ne.s32.totalorder %s222, %s223
      %p237 = scmp.eq.s32.totalorder %s21, 1
      %p238 = por %p236, %p237
      %p240 = scmp.ne.s32.totalorder %s223, %s239
      %p241 = scmp.eq.s32.totalorder %s21, 0
      %p242 = por %p240, %p241
      %p243 = scmp.le.s32.totalorder 1, %s15
      %p244 = scmp.lt.s32.totalorder %s15, 3
      %p245 = pnand %p243, %p244
      %p246 = pneg %p245
      // Predicated region
      $region9: #{tpu_custom_call.1} parent=5 // pred_check
        _
      $region10: #{tpu_custom_call.1} parent=5 // pred_check_branch
        %248 = sbr.rel (%p245) target = $region12
      $region11: #{tpu_custom_call.1} parent=5 // pred_region
        %s249 = ssub.s32 %s15, 1
        // Predicated region
        $region13: #{tpu_custom_call.1} parent=11 // pred_check
          %p250 = pneg %p62
        $region14: #{tpu_custom_call.1} parent=11 // pred_check_branch
          %252 = sbr.rel (%p250) target = $region16
        $region15: #{tpu_custom_call.1} parent=11 // pred_region
          _
        $region16: #{tpu_custom_call.1} parent=11 // pred_fallthru
          _
        // Predicated region
        $region17: #{tpu_custom_call.1} parent=11 // pred_check
          %p253 = pneg %p83
        $region18: #{tpu_custom_call.1} parent=11 // pred_check_branch
          %255 = sbr.rel (%p253) target = $region20
        $region19: #{tpu_custom_call.1} parent=11 // pred_region
          _
        $region20: #{tpu_custom_call.1} parent=11 // pred_fallthru
          _
        // Predicated region
        $region21: #{tpu_custom_call.1} parent=11 // pred_check
          %p256 = pneg %p104
        $region22: #{tpu_custom_call.1} parent=11 // pred_check_branch
          %258 = sbr.rel (%p256) target = $region24
        $region23: #{tpu_custom_call.1} parent=11 // pred_region
          _
        $region24: #{tpu_custom_call.1} parent=11 // pred_fallthru
          _
        // Predicated region
        $region25: #{tpu_custom_call.1} parent=11 // pred_check
          %p259 = pneg %p125
        $region26: #{tpu_custom_call.1} parent=11 // pred_check_branch
          %261 = sbr.rel (%p259) target = $region28
        $region27: #{tpu_custom_call.1} parent=11 // pred_region
          _
        $region28: #{tpu_custom_call.1} parent=11 // pred_fallthru
          _
        // Predicated region
        $region29: #{tpu_custom_call.1} parent=11 // pred_check
          %p262 = pneg %p146
        $region30: #{tpu_custom_call.1} parent=11 // pred_check_branch
          %264 = sbr.rel (%p262) target = $region32
        $region31: #{tpu_custom_call.1} parent=11 // pred_region
          _
        $region32: #{tpu_custom_call.1} parent=11 // pred_fallthru
          _
        // Predicated region
        $region33: #{tpu_custom_call.1} parent=11 // pred_check
          %p265 = pneg %p167
        $region34: #{tpu_custom_call.1} parent=11 // pred_check_branch
          %267 = sbr.rel (%p265) target = $region36
        $region35: #{tpu_custom_call.1} parent=11 // pred_region
          _
        $region36: #{tpu_custom_call.1} parent=11 // pred_fallthru
          _
        // Predicated region
        $region37: #{tpu_custom_call.1} parent=11 // pred_check
          %p268 = pneg %p188
        $region38: #{tpu_custom_call.1} parent=11 // pred_check_branch
          %270 = sbr.rel (%p268) target = $region40
        $region39: #{tpu_custom_call.1} parent=11 // pred_region
          _
        $region40: #{tpu_custom_call.1} parent=11 // pred_fallthru
          _
        // Predicated region
        $region41: #{tpu_custom_call.1} parent=11 // pred_check
          %p271 = pneg %p209
        $region42: #{tpu_custom_call.1} parent=11 // pred_check_branch
          %273 = sbr.rel (%p271) target = $region44
        $region43: #{tpu_custom_call.1} parent=11 // pred_region
          _
        $region44: #{tpu_custom_call.1} parent=11 // pred_fallthru
          _
      $region12: #{tpu_custom_call.1} parent=5 // pred_fallthru
        _
      %p274 = scmp.lt.s32.totalorder %s15, 2
      // Predicated region
      $region45: #{tpu_custom_call.1} parent=5 // pred_check
        %p275 = pneg %p274
      $region46: #{tpu_custom_call.1} parent=5 // pred_check_branch
        %277 = sbr.rel (%p275) target = $region48
      $region47: #{tpu_custom_call.1} parent=5 // pred_region
        // Predicated region
        $region49: #{tpu_custom_call.1} parent=47 // pred_check
          %p278 = pneg %p35
        $region50: #{tpu_custom_call.1} parent=47 // pred_check_branch
          %280 = sbr.rel (%p278) target = $region52
        $region51: #{tpu_custom_call.1} parent=47 // pred_region
          %s281 = smul.u32 64, %s15
          %s282 = ssub.s32 125, %s281
          %p283 = scmp.lt.s32.totalorder %s282, 64
          %s284 = scalar_select %p283, %s282, 64
          %s285 = smul.u32 8, %s284
          %p286 = scmp.lt.s32.totalorder %s281, 124
          %s287 = scalar_select %p286, %s281, 124
          %s288 = smul.addr %s287, 8
          %s289 = scalar_lea.vmem %s0, %s288
          %s290 = smul.u32 64, %s15
          %s291 = ssub.s32 125, %s290
          %p292 = scmp.lt.s32.totalorder %s291, 64
          %s293 = scalar_select %p292, %s291, 64
          %s294 = smul.u32 8, %s293
        $region52: #{tpu_custom_call.1} parent=47 // pred_fallthru
          _
      $region48: #{tpu_custom_call.1} parent=5 // pred_fallthru
        _
      %p295 = scmp.le.s32.totalorder 1, %s15
      %p296 = scmp.lt.s32.totalorder %s15, 3
      %p297 = pnand %p295, %p296
      %p298 = pneg %p297
      // Predicated region
      $region53: #{tpu_custom_call.1} parent=5 // pred_check
        _
      $region54: #{tpu_custom_call.1} parent=5 // pred_check_branch
        %300 = sbr.rel (%p297) target = $region56
      $region55: #{tpu_custom_call.1} parent=5 // pred_region
        %s301 = ssub.s32 %s15, 1
        %s302 = smul.u32 64, %s20
        %s303 = ssub.s32 125, %s302
        %p304 = scmp.lt.s32.totalorder %s303, 64
        %s305 = scalar_select %p304, %s303, 64
        %s306 = smul.u32 8, %s305
        %p307 = scmp.lt.s32.totalorder %s302, 124
        %s308 = scalar_select %p307, %s302, 124
        %s309 = smul.addr %s308, 8
        %s310 = scalar_lea.vmem %s0, %s309
        %p311 = pneg %p41
        %p312 = pneg %p38
        %p313 = pneg %p62
        %p314 = pneg %p59
        %p315 = pneg %p83
        %p316 = pneg %p80
        %p317 = pneg %p104
        %p318 = pneg %p101
        %p319 = pneg %p125
        %p320 = pneg %p122
        %p321 = pneg %p146
        %p322 = pneg %p143
        %p323 = pneg %p167
        %p324 = pneg %p164
        %p325 = pneg %p188
        %p326 = pneg %p185
        %p327 = pneg %p209
        %p328 = pneg %p206
        %p329 = pneg %p235
        %p330 = pneg %p232
        %s331 = sand.u32 %s222, 1
        %s332 = sand.u32 %s222, 1
        %s333 = smul.addr %s332, 512
        %s334 = scalar_lea.vmem [#allocation2], %s333
        %s335 = smul.u32 64, %s20
        %s336 = ssub.s32 125, %s335
        %p337 = scmp.lt.s32.totalorder %s336, 64
        %s338 = scalar_select %p337, %s336, 64
        %s339 = smul.u32 8, %s338
        %p340 = scmp.lt.s32.totalorder %s335, 124
        %s341 = scalar_select %p340, %s335, 124
        %s342 = smul.addr %s341, 8
        %s343 = scalar_lea.vmem %s0, %s342
        %s344 = smul.u32 64, %s20
        %s345 = ssub.s32 125, %s344
        %p346 = scmp.lt.s32.totalorder %s345, 64
        %s347 = scalar_select %p346, %s345, 64
        %s348 = smul.u32 8, %s347
        %s349 = smul.u32 64, %s20
        %s350 = ssub.s32 125, %s349
        %p351 = scmp.lt.s32.totalorder %s350, 64
        %s352 = scalar_select %p351, %s350, 64
        %s353 = smul.u32 8, %s352
        %v354 = vld [vmem:[%s343] sm:$0xff]
        %v355 = vld [vmem:[%s343 + $0x8] sm:$0xff]
        %v356 = vld [vmem:[%s343 + $0x10] sm:$0xff]
        %v357 = vld [vmem:[%s343 + $0x18] sm:$0xff]
        %v358 = vld [vmem:[%s343 + $0x20] sm:$0xff]
        %v359 = vld [vmem:[%s343 + $0x28] sm:$0xff]
        %v360 = vld [vmem:[%s343 + $0x30] sm:$0xff]
        %v361 = vld [vmem:[%s343 + $0x38] sm:$0xff]
        %v362 = vld [vmem:[%s343 + $0x40] sm:$0xff]
        %v363 = vld [vmem:[%s343 + $0x48] sm:$0xff]
        %v364 = vld [vmem:[%s343 + $0x50] sm:$0xff]
        %v365 = vld [vmem:[%s343 + $0x58] sm:$0xff]
        %v366 = vld [vmem:[%s343 + $0x60] sm:$0xff]
        %v367 = vld [vmem:[%s343 + $0x68] sm:$0xff]
        %v368 = vld [vmem:[%s343 + $0x70] sm:$0xff]
        %v369 = vld [vmem:[%s343 + $0x78] sm:$0xff]
        %v370 = vld [vmem:[%s343 + $0x80] sm:$0xff]
        %v371 = vld [vmem:[%s343 + $0x88] sm:$0xff]
        %v372 = vld [vmem:[%s343 + $0x90] sm:$0xff]
        %v373 = vld [vmem:[%s343 + $0x98] sm:$0xff]
        %v374 = vld [vmem:[%s343 + $0xa0] sm:$0xff]
        %v375 = vld [vmem:[%s343 + $0xa8] sm:$0xff]
        %v376 = vld [vmem:[%s343 + $0xb0] sm:$0xff]
        %v377 = vld [vmem:[%s343 + $0xb8] sm:$0xff]
        %v378 = vld [vmem:[%s343 + $0xc0] sm:$0xff]
        %v379 = vld [vmem:[%s343 + $0xc8] sm:$0xff]
        %v380 = vld [vmem:[%s343 + $0xd0] sm:$0xff]
        %v381 = vld [vmem:[%s343 + $0xd8] sm:$0xff]
        %v382 = vld [vmem:[%s343 + $0xe0] sm:$0xff]
        %v383 = vld [vmem:[%s343 + $0xe8] sm:$0xff]
        %v384 = vld [vmem:[%s343 + $0xf0] sm:$0xff]
        %v385 = vld [vmem:[%s343 + $0xf8] sm:$0xff]
        %v386 = vld [vmem:[%s343 + $0x100] sm:$0xff]
        %v387 = vld [vmem:[%s343 + $0x108] sm:$0xff]
        %v388 = vld [vmem:[%s343 + $0x110] sm:$0xff]
        %v389 = vld [vmem:[%s343 + $0x118] sm:$0xff]
        %v390 = vld [vmem:[%s343 + $0x120] sm:$0xff]
        %v391 = vld [vmem:[%s343 + $0x128] sm:$0xff]
        %v392 = vld [vmem:[%s343 + $0x130] sm:$0xff]
        %v393 = vld [vmem:[%s343 + $0x138] sm:$0xff]
        %v394 = vld [vmem:[%s343 + $0x140] sm:$0xff]
        %v395 = vld [vmem:[%s343 + $0x148] sm:$0xff]
        %v396 = vld [vmem:[%s343 + $0x150] sm:$0xff]
        %v397 = vld [vmem:[%s343 + $0x158] sm:$0xff]
        %v398 = vld [vmem:[%s343 + $0x160] sm:$0xff]
        %v399 = vld [vmem:[%s343 + $0x168] sm:$0xff]
        %v400 = vld [vmem:[%s343 + $0x170] sm:$0xff]
        %v401 = vld [vmem:[%s343 + $0x178] sm:$0xff]
        %v402 = vld [vmem:[%s343 + $0x180] sm:$0xff]
        %v403 = vld [vmem:[%s343 + $0x188] sm:$0xff]
        %v404 = vld [vmem:[%s343 + $0x190] sm:$0xff]
        %v405 = vld [vmem:[%s343 + $0x198] sm:$0xff]
        %v406 = vld [vmem:[%s343 + $0x1a0] sm:$0xff]
        %v407 = vld [vmem:[%s343 + $0x1a8] sm:$0xff]
        %v408 = vld [vmem:[%s343 + $0x1b0] sm:$0xff]
        %v409 = vld [vmem:[%s343 + $0x1b8] sm:$0xff]
        %v410 = vld [vmem:[%s343 + $0x1c0] sm:$0xff]
        %v411 = vld [vmem:[%s343 + $0x1c8] sm:$0xff]
        %v412 = vld [vmem:[%s343 + $0x1d0] sm:$0xff]
        %v413 = vld [vmem:[%s343 + $0x1d8] sm:$0xff]
        %v414 = vld [vmem:[%s343 + $0x1e0] sm:$0xff]
        %v415 = vld [vmem:[%s343 + $0x1e8] sm:$0xff]
        %v416 = vld [vmem:[%s343 + $0x1f0] sm:$0xff]
        %v417 = vld [vmem:[%s343 + $0x1f8] sm:$0xff]
        %v418 = vld [vmem:[%s1] sm:$0xff]
        %v419 = vld [vmem:[%s1 + $0x8] sm:$0xff]
        %v420 = vld [vmem:[%s1 + $0x10] sm:$0xff]
        %v421 = vld [vmem:[%s1 + $0x18] sm:$0xff]
        %v422 = vld [vmem:[%s2] sm:$0xff]
        %v423 = vld [vmem:[%s2 + $0x8] sm:$0xff]
        %v424 = vld [vmem:[%s2 + $0x10] sm:$0xff]
        %v425 = vld [vmem:[%s2 + $0x18] sm:$0xff]
        %427 = vset.pattern.permute.xlu0 0
        %428 = vperm.xlu0 %427, %v422
        %v429 = vpop.permute.xlu0 %428
        %432 = vset.pattern.permute.xlu0 0
        %433 = vperm.xlu0 %432, %v423
        %v434 = vpop.permute.xlu0 %433
        %437 = vset.pattern.permute.xlu0 0
        %438 = vperm.xlu0 %437, %v424
        %v439 = vpop.permute.xlu0 %438
        %442 = vset.pattern.permute.xlu0 0
        %443 = vperm.xlu0 %442, %v425
        %v444 = vpop.permute.xlu0 %443
        %vm446 = vcmask 31744
        %v448 = vsel %vm446, %v418, 0
        %v451 = vsel %vm446, %v419, 0
        %v454 = vsel %vm446, %v420, 0
        %v457 = vsel %vm446, %v421, 0
        %v460 = vsel %vm446, %v354, 0
        %v463 = vsel %vm446, %v355, 0
        %v466 = vsel %vm446, %v356, 0
        %v469 = vsel %vm446, %v357, 0
        %v472 = vsel %vm446, %v358, 0
        %v475 = vsel %vm446, %v359, 0
        %v478 = vsel %vm446, %v360, 0
        %v481 = vsel %vm446, %v361, 0
        %v484 = vsel %vm446, %v362, 0
        %v487 = vsel %vm446, %v363, 0
        %v490 = vsel %vm446, %v364, 0
        %v493 = vsel %vm446, %v365, 0
        %v496 = vsel %vm446, %v366, 0
        %v499 = vsel %vm446, %v367, 0
        %v502 = vsel %vm446, %v368, 0
        %v505 = vsel %vm446, %v369, 0
        %v508 = vsel %vm446, %v370, 0
        %v511 = vsel %vm446, %v371, 0
        %v514 = vsel %vm446, %v372, 0
        %v517 = vsel %vm446, %v373, 0
        %v520 = vsel %vm446, %v374, 0
        %v523 = vsel %vm446, %v375, 0
        %v526 = vsel %vm446, %v376, 0
        %v529 = vsel %vm446, %v377, 0
        %v532 = vsel %vm446, %v378, 0
        %v535 = vsel %vm446, %v379, 0
        %v538 = vsel %vm446, %v380, 0
        %v541 = vsel %vm446, %v381, 0
        %v544 = vsel %vm446, %v382, 0
        %v547 = vsel %vm446, %v383, 0
        %v550 = vsel %vm446, %v384, 0
        %v553 = vsel %vm446, %v385, 0
        %v556 = vsel %vm446, %v386, 0
        %v559 = vsel %vm446, %v387, 0
        %v562 = vsel %vm446, %v388, 0
        %v565 = vsel %vm446, %v389, 0
        %v568 = vsel %vm446, %v390, 0
        %v571 = vsel %vm446, %v391, 0
        %v574 = vsel %vm446, %v392, 0
        %v577 = vsel %vm446, %v393, 0
        %v580 = vsel %vm446, %v394, 0
        %v583 = vsel %vm446, %v395, 0
        %v586 = vsel %vm446, %v396, 0
        %v589 = vsel %vm446, %v397, 0
        %v592 = vsel %vm446, %v398, 0
        %v595 = vsel %vm446, %v399, 0
        %v598 = vsel %vm446, %v400, 0
        %v601 = vsel %vm446, %v401, 0
        %v604 = vsel %vm446, %v402, 0
        %v607 = vsel %vm446, %v403, 0
        %v610 = vsel %vm446, %v404, 0
        %v613 = vsel %vm446, %v405, 0
        %v616 = vsel %vm446, %v406, 0
        %v619 = vsel %vm446, %v407, 0
        %v622 = vsel %vm446, %v408, 0
        %v625 = vsel %vm446, %v409, 0
        %v628 = vsel %vm446, %v410, 0
        %v631 = vsel %vm446, %v411, 0
        %v634 = vsel %vm446, %v412, 0
        %v637 = vsel %vm446, %v413, 0
        %v640 = vsel %vm446, %v414, 0
        %v643 = vsel %vm446, %v415, 0
        %v646 = vsel %vm446, %v416, 0
        %v649 = vsel %vm446, %v417, 0
        %651 = vmatpush.xpose.msra.mxu0 %v505
        %652 = vmatpush.xpose.msra.mxu0 %v502
        %653 = vmatpush.xpose.msra.mxu0 %v499
        %654 = vmatpush.xpose.msra.mxu0 %v496
        %655 = vmatpush.xpose.msra.mxu0 %v493
        %656 = vmatpush.xpose.msra.mxu0 %v490
        %657 = vmatpush.xpose.msra.mxu0 %v487
        %658 = vmatpush.xpose.msra.mxu0 %v484
        %659 = vmatpush.xpose.msra.mxu0 %v481
        %660 = vmatpush.xpose.msra.mxu0 %v478
        %661 = vmatpush.xpose.msra.mxu0 %v475
        %662 = vmatpush.xpose.msra.mxu0 %v472
        %663 = vmatpush.xpose.msra.mxu0 %v469
        %664 = vmatpush.xpose.msra.mxu0 %v466
        %665 = vmatpush.xpose.msra.mxu0 %v463
        %666 = vmatpush.xpose.msra.mxu0 %v460
        %667 = vmatmul.f32.gmra.mxu0 %v448
        %v668 = vpop.f32.mrf.mxu0
        %v669 = vadd.f32 %v429, %v668
        %670 = vmatmul.f32.gmra.mxu0 %v451
        %v671 = vpop.f32.mrf.mxu0
        %v672 = vadd.f32 %v434, %v671
        %673 = vmatmul.f32.gmra.mxu0 %v454
        %v674 = vpop.f32.mrf.mxu0
        %v675 = vadd.f32 %v439, %v674
        %676 = vmatmul.f32.gmra.mxu0 %v457
        %v677 = vpop.f32.mrf.mxu0
        %v678 = vadd.f32 %v444, %v677
        %679 = vdwg.mxu0
        %680 = vmatpush.xpose.msra.mxu0 %v553
        %681 = vmatpush.xpose.msra.mxu0 %v550
        %682 = vmatpush.xpose.msra.mxu0 %v547
        %683 = vmatpush.xpose.msra.mxu0 %v544
        %684 = vmatpush.xpose.msra.mxu0 %v541
        %685 = vmatpush.xpose.msra.mxu0 %v538
        %686 = vmatpush.xpose.msra.mxu0 %v535
        %687 = vmatpush.xpose.msra.mxu0 %v532
        %688 = vmatpush.xpose.msra.mxu0 %v529
        %689 = vmatpush.xpose.msra.mxu0 %v526
        %690 = vmatpush.xpose.msra.mxu0 %v523
        %691 = vmatpush.xpose.msra.mxu0 %v520
        %692 = vmatpush.xpose.msra.mxu0 %v517
        %693 = vmatpush.xpose.msra.mxu0 %v514
        %694 = vmatpush.xpose.msra.mxu0 %v511
        %695 = vmatpush.xpose.msra.mxu0 %v508
        %696 = vmatmul.f32.gmra.mxu0 %v448
        %v697 = vpop.f32.mrf.mxu0
        %v698 = vadd.f32 %v429, %v697
        %699 = vmatmul.f32.gmra.mxu0 %v451
        %v700 = vpop.f32.mrf.mxu0
        %v701 = vadd.f32 %v434, %v700
        %702 = vmatmul.f32.gmra.mxu0 %v454
        %v703 = vpop.f32.mrf.mxu0
        %v704 = vadd.f32 %v439, %v703
        %705 = vmatmul.f32.gmra.mxu0 %v457
        %v706 = vpop.f32.mrf.mxu0
        %v707 = vadd.f32 %v444, %v706
        %708 = vdwg.mxu0
        %709 = vmatpush.xpose.msra.mxu0 %v601
        %710 = vmatpush.xpose.msra.mxu0 %v598
        %711 = vmatpush.xpose.msra.mxu0 %v595
        %712 = vmatpush.xpose.msra.mxu0 %v592
        %713 = vmatpush.xpose.msra.mxu0 %v589
        %714 = vmatpush.xpose.msra.mxu0 %v586
        %715 = vmatpush.xpose.msra.mxu0 %v583
        %716 = vmatpush.xpose.msra.mxu0 %v580
        %717 = vmatpush.xpose.msra.mxu0 %v577
        %718 = vmatpush.xpose.msra.mxu0 %v574
        %719 = vmatpush.xpose.msra.mxu0 %v571
        %720 = vmatpush.xpose.msra.mxu0 %v568
        %721 = vmatpush.xpose.msra.mxu0 %v565
        %722 = vmatpush.xpose.msra.mxu0 %v562
        %723 = vmatpush.xpose.msra.mxu0 %v559
        %724 = vmatpush.xpose.msra.mxu0 %v556
        %725 = vmatmul.f32.gmra.mxu0 %v448
        %v726 = vpop.f32.mrf.mxu0
        %v727 = vadd.f32 %v429, %v726
        %728 = vmatmul.f32.gmra.mxu0 %v451
        %v729 = vpop.f32.mrf.mxu0
        %v730 = vadd.f32 %v434, %v729
        %731 = vmatmul.f32.gmra.mxu0 %v454
        %v732 = vpop.f32.mrf.mxu0
        %v733 = vadd.f32 %v439, %v732
        %734 = vmatmul.f32.gmra.mxu0 %v457
        %v735 = vpop.f32.mrf.mxu0
        %v736 = vadd.f32 %v444, %v735
        %737 = vdwg.mxu0
        %738 = vmatpush.xpose.msra.mxu0 %v649
        %739 = vmatpush.xpose.msra.mxu0 %v646
        %740 = vmatpush.xpose.msra.mxu0 %v643
        %741 = vmatpush.xpose.msra.mxu0 %v640
        %742 = vmatpush.xpose.msra.mxu0 %v637
        %743 = vmatpush.xpose.msra.mxu0 %v634
        %744 = vmatpush.xpose.msra.mxu0 %v631
        %745 = vmatpush.xpose.msra.mxu0 %v628
        %746 = vmatpush.xpose.msra.mxu0 %v625
        %747 = vmatpush.xpose.msra.mxu0 %v622
        %748 = vmatpush.xpose.msra.mxu0 %v619
        %749 = vmatpush.xpose.msra.mxu0 %v616
        %750 = vmatpush.xpose.msra.mxu0 %v613
        %751 = vmatpush.xpose.msra.mxu0 %v610
        %752 = vmatpush.xpose.msra.mxu0 %v607
        %753 = vmatpush.xpose.msra.mxu0 %v604
        %754 = vmatmul.f32.gmra.mxu0 %v448
        %v755 = vpop.f32.mrf.mxu0
        %v756 = vadd.f32 %v429, %v755
        %757 = vmatmul.f32.gmra.mxu0 %v451
        %v758 = vpop.f32.mrf.mxu0
        %v759 = vadd.f32 %v434, %v758
        %760 = vmatmul.f32.gmra.mxu0 %v454
        %v761 = vpop.f32.mrf.mxu0
        %v762 = vadd.f32 %v439, %v761
        %763 = vmatmul.f32.gmra.mxu0 %v457
        %v764 = vpop.f32.mrf.mxu0
        %v765 = vadd.f32 %v444, %v764
        %766 = vdwg.mxu0
        %v767 = vtanh.pop %v669
        %v768 = vtanh.pop %v698
        %v769 = vtanh.pop %v727
        %v770 = vtanh.pop %v756
        %v771 = vtanh.pop %v672
        %v772 = vtanh.pop %v701
        %v773 = vtanh.pop %v730
        %v774 = vtanh.pop %v759
        %v775 = vtanh.pop %v675
        %v776 = vtanh.pop %v704
        %v777 = vtanh.pop %v733
        %v778 = vtanh.pop %v762
        %v779 = vtanh.pop %v678
        %v780 = vtanh.pop %v707
        %v781 = vtanh.pop %v736
        %v782 = vtanh.pop %v765
        %v783 = vld [vmem:[%s3] sm:$0xff]
        %v784 = vld [vmem:[%s3 + $0x8] sm:$0xff]
        %v785 = vld [vmem:[%s3 + $0x10] sm:$0xff]
        %v786 = vld [vmem:[%s3 + $0x18] sm:$0xff]
        %v787 = vld [vmem:[%s4] sm:$0xff]
        %v788 = vld [vmem:[%s4 + $0x8] sm:$0xff]
        %v789 = vld [vmem:[%s4 + $0x10] sm:$0xff]
        %v790 = vld [vmem:[%s4 + $0x18] sm:$0xff]
        %792 = vset.pattern.permute.xlu0 0
        %793 = vperm.xlu0 %792, %v787
        %v794 = vpop.permute.xlu0 %793
        %797 = vset.pattern.permute.xlu0 0
        %798 = vperm.xlu0 %797, %v788
        %v799 = vpop.permute.xlu0 %798
        %802 = vset.pattern.permute.xlu0 0
        %803 = vperm.xlu0 %802, %v789
        %v804 = vpop.permute.xlu0 %803
        %807 = vset.pattern.permute.xlu0 0
        %808 = vperm.xlu0 %807, %v790
        %v809 = vpop.permute.xlu0 %808
        %vm811 = vcmask 261120
        %v813 = vsel %vm811, %v783, 0
        %v816 = vsel %vm811, %v784, 0
        %v819 = vsel %vm811, %v785, 0
        %v822 = vsel %vm811, %v786, 0
        %824 = vmatpush.msra.mxu0 0.0
        %825 = vmatpush.msra.mxu0 0.0
        %826 = vmatpush.msra.mxu0 0.0
        %827 = vmatpush.msra.mxu0 0.0
        %828 = vmatpush.msra.mxu0 0.0
        %829 = vmatpush.msra.mxu0 0.0
        %830 = vmatpush.msra.mxu0 0.0
        %831 = vmatpush.msra.mxu0 0.0
        %832 = vmatpush.msra.mxu0 0.0
        %833 = vmatpush.msra.mxu0 0.0
        %834 = vmatpush.msra.mxu0 0.0
        %835 = vmatpush.msra.mxu0 0.0
        %836 = vmatpush.msra.mxu0 %v779
        %837 = vmatpush.msra.mxu0 %v775
        %838 = vmatpush.msra.mxu0 %v771
        %839 = vmatpush.msra.mxu0 %v767
        %840 = vmatmul.f32.gmra.mxu0 %v813
        %v841 = vpop.f32.mrf.mxu0
        %v842 = vadd.f32 %v794, %v841
        %843 = vmatmul.f32.gmra.mxu0 %v816
        %v844 = vpop.f32.mrf.mxu0
        %v845 = vadd.f32 %v799, %v844
        %846 = vmatmul.f32.gmra.mxu0 %v819
        %v847 = vpop.f32.mrf.mxu0
        %v848 = vadd.f32 %v804, %v847
        %849 = vmatmul.f32.gmra.mxu0 %v822
        %v850 = vpop.f32.mrf.mxu0
        %v851 = vadd.f32 %v809, %v850
        %852 = vdwg.mxu0
        %853 = vmatpush.msra.mxu0 0.0
        %854 = vmatpush.msra.mxu0 0.0
        %855 = vmatpush.msra.mxu0 0.0
        %856 = vmatpush.msra.mxu0 0.0
        %857 = vmatpush.msra.mxu0 0.0
        %858 = vmatpush.msra.mxu0 0.0
        %859 = vmatpush.msra.mxu0 0.0
        %860 = vmatpush.msra.mxu0 0.0
        %861 = vmatpush.msra.mxu0 0.0
        %862 = vmatpush.msra.mxu0 0.0
        %863 = vmatpush.msra.mxu0 0.0
        %864 = vmatpush.msra.mxu0 0.0
        %865 = vmatpush.msra.mxu0 %v780
        %866 = vmatpush.msra.mxu0 %v776
        %867 = vmatpush.msra.mxu0 %v772
        %868 = vmatpush.msra.mxu0 %v768
        %869 = vmatmul.f32.gmra.mxu0 %v813
        %v870 = vpop.f32.mrf.mxu0
        %v871 = vadd.f32 %v794, %v870
        %872 = vmatmul.f32.gmra.mxu0 %v816
        %v873 = vpop.f32.mrf.mxu0
        %v874 = vadd.f32 %v799, %v873
        %875 = vmatmul.f32.gmra.mxu0 %v819
        %v876 = vpop.f32.mrf.mxu0
        %v877 = vadd.f32 %v804, %v876
        %878 = vmatmul.f32.gmra.mxu0 %v822
        %v879 = vpop.f32.mrf.mxu0
        %v880 = vadd.f32 %v809, %v879
        %881 = vdwg.mxu0
        %882 = vmatpush.msra.mxu0 0.0
        %883 = vmatpush.msra.mxu0 0.0
        %884 = vmatpush.msra.mxu0 0.0
        %885 = vmatpush.msra.mxu0 0.0
        %886 = vmatpush.msra.mxu0 0.0
        %887 = vmatpush.msra.mxu0 0.0
        %888 = vmatpush.msra.mxu0 0.0
        %889 = vmatpush.msra.mxu0 0.0
        %890 = vmatpush.msra.mxu0 0.0
        %891 = vmatpush.msra.mxu0 0.0
        %892 = vmatpush.msra.mxu0 0.0
        %893 = vmatpush.msra.mxu0 0.0
        %894 = vmatpush.msra.mxu0 %v781
        %895 = vmatpush.msra.mxu0 %v777
        %896 = vmatpush.msra.mxu0 %v773
        %897 = vmatpush.msra.mxu0 %v769
        %898 = vmatmul.f32.gmra.mxu0 %v813
        %v899 = vpop.f32.mrf.mxu0
        %v900 = vadd.f32 %v794, %v899
        %901 = vmatmul.f32.gmra.mxu0 %v816
        %v902 = vpop.f32.mrf.mxu0
        %v903 = vadd.f32 %v799, %v902
        %904 = vmatmul.f32.gmra.mxu0 %v819
        %v905 = vpop.f32.mrf.mxu0
        %v906 = vadd.f32 %v804, %v905
        %907 = vmatmul.f32.gmra.mxu0 %v822
        %v908 = vpop.f32.mrf.mxu0
        %v909 = vadd.f32 %v809, %v908
        %910 = vdwg.mxu0
        %911 = vmatpush.msra.mxu0 0.0
        %912 = vmatpush.msra.mxu0 0.0
        %913 = vmatpush.msra.mxu0 0.0
        %914 = vmatpush.msra.mxu0 0.0
        %915 = vmatpush.msra.mxu0 0.0
        %916 = vmatpush.msra.mxu0 0.0
        %917 = vmatpush.msra.mxu0 0.0
        %918 = vmatpush.msra.mxu0 0.0
        %919 = vmatpush.msra.mxu0 0.0
        %920 = vmatpush.msra.mxu0 0.0
        %921 = vmatpush.msra.mxu0 0.0
        %922 = vmatpush.msra.mxu0 0.0
        %923 = vmatpush.msra.mxu0 %v782
        %924 = vmatpush.msra.mxu0 %v778
        %925 = vmatpush.msra.mxu0 %v774
        %926 = vmatpush.msra.mxu0 %v770
        %927 = vmatmul.f32.gmra.mxu0 %v813
        %v928 = vpop.f32.mrf.mxu0
        %v929 = vadd.f32 %v794, %v928
        %930 = vmatmul.f32.gmra.mxu0 %v816
        %v931 = vpop.f32.mrf.mxu0
        %v932 = vadd.f32 %v799, %v931
        %933 = vmatmul.f32.gmra.mxu0 %v819
        %v934 = vpop.f32.mrf.mxu0
        %v935 = vadd.f32 %v804, %v934
        %936 = vmatmul.f32.gmra.mxu0 %v822
        %v937 = vpop.f32.mrf.mxu0
        %v938 = vadd.f32 %v809, %v937
        %939 = vdwg.mxu0
        %v940 = vtanh.pop %v842
        %v941 = vtanh.pop %v871
        %v942 = vtanh.pop %v900
        %v943 = vtanh.pop %v929
        %v944 = vtanh.pop %v845
        %v945 = vtanh.pop %v874
        %v946 = vtanh.pop %v903
        %v947 = vtanh.pop %v932
        %v948 = vtanh.pop %v848
        %v949 = vtanh.pop %v877
        %v950 = vtanh.pop %v906
        %v951 = vtanh.pop %v935
        %v952 = vtanh.pop %v851
        %v953 = vtanh.pop %v880
        %v954 = vtanh.pop %v909
        %v955 = vtanh.pop %v938
        %v956 = vld [vmem:[%s5] sm:$0xff]
        %v957 = vld [vmem:[%s5 + $0x8] sm:$0xff]
        %v958 = vld [vmem:[%s5 + $0x10] sm:$0xff]
        %v959 = vld [vmem:[%s5 + $0x18] sm:$0xff]
        %v960 = vld [vmem:[%s6] sm:$0xff]
        %v961 = vld [vmem:[%s6 + $0x8] sm:$0xff]
        %v962 = vld [vmem:[%s6 + $0x10] sm:$0xff]
        %v963 = vld [vmem:[%s6 + $0x18] sm:$0xff]
        %965 = vset.pattern.permute.xlu0 0
        %966 = vperm.xlu0 %965, %v960
        %v967 = vpop.permute.xlu0 %966
        %970 = vset.pattern.permute.xlu0 0
        %971 = vperm.xlu0 %970, %v961
        %v972 = vpop.permute.xlu0 %971
        %975 = vset.pattern.permute.xlu0 0
        %976 = vperm.xlu0 %975, %v962
        %v977 = vpop.permute.xlu0 %976
        %980 = vset.pattern.permute.xlu0 0
        %981 = vperm.xlu0 %980, %v963
        %v982 = vpop.permute.xlu0 %981
        %v985 = vsel %vm811, %v956, 0
        %v988 = vsel %vm811, %v957, 0
        %v991 = vsel %vm811, %v958, 0
        %v994 = vsel %vm811, %v959, 0
        %996 = vmatpush.msra.mxu0 0.0
        %997 = vmatpush.msra.mxu0 0.0
        %998 = vmatpush.msra.mxu0 0.0
        %999 = vmatpush.msra.mxu0 0.0
        %1000 = vmatpush.msra.mxu0 0.0
        %1001 = vmatpush.msra.mxu0 0.0
        %1002 = vmatpush.msra.mxu0 0.0
        %1003 = vmatpush.msra.mxu0 0.0
        %1004 = vmatpush.msra.mxu0 0.0
        %1005 = vmatpush.msra.mxu0 0.0
        %1006 = vmatpush.msra.mxu0 0.0
        %1007 = vmatpush.msra.mxu0 0.0
        %1008 = vmatpush.msra.mxu0 %v952
        %1009 = vmatpush.msra.mxu0 %v948
        %1010 = vmatpush.msra.mxu0 %v944
        %1011 = vmatpush.msra.mxu0 %v940
        %1012 = vmatmul.f32.gmra.mxu0 %v985
        %v1013 = vpop.f32.mrf.mxu0
        %v1014 = vadd.f32 %v967, %v1013
        %1015 = vmatmul.f32.gmra.mxu0 %v988
        %v1016 = vpop.f32.mrf.mxu0
        %v1017 = vadd.f32 %v972, %v1016
        %1018 = vmatmul.f32.gmra.mxu0 %v991
        %v1019 = vpop.f32.mrf.mxu0
        %v1020 = vadd.f32 %v977, %v1019
        %1021 = vmatmul.f32.gmra.mxu0 %v994
        %v1022 = vpop.f32.mrf.mxu0
        %v1023 = vadd.f32 %v982, %v1022
        %1024 = vdwg.mxu0
        %1025 = vmatpush.msra.mxu0 0.0
        %1026 = vmatpush.msra.mxu0 0.0
        %1027 = vmatpush.msra.mxu0 0.0
        %1028 = vmatpush.msra.mxu0 0.0
        %1029 = vmatpush.msra.mxu0 0.0
        %1030 = vmatpush.msra.mxu0 0.0
        %1031 = vmatpush.msra.mxu0 0.0
        %1032 = vmatpush.msra.mxu0 0.0
        %1033 = vmatpush.msra.mxu0 0.0
        %1034 = vmatpush.msra.mxu0 0.0
        %1035 = vmatpush.msra.mxu0 0.0
        %1036 = vmatpush.msra.mxu0 0.0
        %1037 = vmatpush.msra.mxu0 %v953
        %1038 = vmatpush.msra.mxu0 %v949
        %1039 = vmatpush.msra.mxu0 %v945
        %1040 = vmatpush.msra.mxu0 %v941
        %1041 = vmatmul.f32.gmra.mxu0 %v985
        %v1042 = vpop.f32.mrf.mxu0
        %v1043 = vadd.f32 %v967, %v1042
        %1044 = vmatmul.f32.gmra.mxu0 %v988
        %v1045 = vpop.f32.mrf.mxu0
        %v1046 = vadd.f32 %v972, %v1045
        %1047 = vmatmul.f32.gmra.mxu0 %v991
        %v1048 = vpop.f32.mrf.mxu0
        %v1049 = vadd.f32 %v977, %v1048
        %1050 = vmatmul.f32.gmra.mxu0 %v994
        %v1051 = vpop.f32.mrf.mxu0
        %v1052 = vadd.f32 %v982, %v1051
        %1053 = vdwg.mxu0
        %1054 = vmatpush.msra.mxu0 0.0
        %1055 = vmatpush.msra.mxu0 0.0
        %1056 = vmatpush.msra.mxu0 0.0
        %1057 = vmatpush.msra.mxu0 0.0
        %1058 = vmatpush.msra.mxu0 0.0
        %1059 = vmatpush.msra.mxu0 0.0
        %1060 = vmatpush.msra.mxu0 0.0
        %1061 = vmatpush.msra.mxu0 0.0
        %1062 = vmatpush.msra.mxu0 0.0
        %1063 = vmatpush.msra.mxu0 0.0
        %1064 = vmatpush.msra.mxu0 0.0
        %1065 = vmatpush.msra.mxu0 0.0
        %1066 = vmatpush.msra.mxu0 %v954
        %1067 = vmatpush.msra.mxu0 %v950
        %1068 = vmatpush.msra.mxu0 %v946
        %1069 = vmatpush.msra.mxu0 %v942
        %1070 = vmatmul.f32.gmra.mxu0 %v985
        %v1071 = vpop.f32.mrf.mxu0
        %v1072 = vadd.f32 %v967, %v1071
        %1073 = vmatmul.f32.gmra.mxu0 %v988
        %v1074 = vpop.f32.mrf.mxu0
        %v1075 = vadd.f32 %v972, %v1074
        %1076 = vmatmul.f32.gmra.mxu0 %v991
        %v1077 = vpop.f32.mrf.mxu0
        %v1078 = vadd.f32 %v977, %v1077
        %1079 = vmatmul.f32.gmra.mxu0 %v994
        %v1080 = vpop.f32.mrf.mxu0
        %v1081 = vadd.f32 %v982, %v1080
        %1082 = vdwg.mxu0
        %1083 = vmatpush.msra.mxu0 0.0
        %1084 = vmatpush.msra.mxu0 0.0
        %1085 = vmatpush.msra.mxu0 0.0
        %1086 = vmatpush.msra.mxu0 0.0
        %1087 = vmatpush.msra.mxu0 0.0
        %1088 = vmatpush.msra.mxu0 0.0
        %1089 = vmatpush.msra.mxu0 0.0
        %1090 = vmatpush.msra.mxu0 0.0
        %1091 = vmatpush.msra.mxu0 0.0
        %1092 = vmatpush.msra.mxu0 0.0
        %1093 = vmatpush.msra.mxu0 0.0
        %1094 = vmatpush.msra.mxu0 0.0
        %1095 = vmatpush.msra.mxu0 %v955
        %1096 = vmatpush.msra.mxu0 %v951
        %1097 = vmatpush.msra.mxu0 %v947
        %1098 = vmatpush.msra.mxu0 %v943
        %1099 = vmatmul.f32.gmra.mxu0 %v985
        %v1100 = vpop.f32.mrf.mxu0
        %v1101 = vadd.f32 %v967, %v1100
        %1102 = vmatmul.f32.gmra.mxu0 %v988
        %v1103 = vpop.f32.mrf.mxu0
        %v1104 = vadd.f32 %v972, %v1103
        %1105 = vmatmul.f32.gmra.mxu0 %v991
        %v1106 = vpop.f32.mrf.mxu0
        %v1107 = vadd.f32 %v977, %v1106
        %1108 = vmatmul.f32.gmra.mxu0 %v994
        %v1109 = vpop.f32.mrf.mxu0
        %v1110 = vadd.f32 %v982, %v1109
        %1111 = vdwg.mxu0
        %v1112 = vtanh.pop %v1014
        %v1113 = vtanh.pop %v1043
        %v1114 = vtanh.pop %v1072
        %v1115 = vtanh.pop %v1101
        %v1116 = vtanh.pop %v1017
        %v1117 = vtanh.pop %v1046
        %v1118 = vtanh.pop %v1075
        %v1119 = vtanh.pop %v1104
        %v1120 = vtanh.pop %v1020
        %v1121 = vtanh.pop %v1049
        %v1122 = vtanh.pop %v1078
        %v1123 = vtanh.pop %v1107
        %v1124 = vtanh.pop %v1023
        %v1125 = vtanh.pop %v1052
        %v1126 = vtanh.pop %v1081
        %v1127 = vtanh.pop %v1110
        %1128 = vxpose.xlu0.b32.start [1/16] %v1112, 128
        %1129 = vxpose.xlu0.b32.cont [2/16] %v1116, 128
        %1130 = vxpose.xlu0.b32.cont [3/16] %v1120, 128
        %1131 = vxpose.xlu0.b32.cont [4/16] %v1124, 128
        %1132 = vxpose.xlu0.b32.cont [5/16] 0.0, 128
        %1133 = vxpose.xlu0.b32.cont [6/16] 0.0, 128
        %1134 = vxpose.xlu0.b32.cont [7/16] 0.0, 128
        %1135 = vxpose.xlu0.b32.cont [8/16] 0.0, 128
        %1136 = vxpose.xlu0.b32.cont [9/16] 0.0, 128
        %1137 = vxpose.xlu0.b32.cont [10/16] 0.0, 128
        %1138 = vxpose.xlu0.b32.cont [11/16] 0.0, 128
        %1139 = vxpose.xlu0.b32.cont [12/16] 0.0, 128
        %1140 = vxpose.xlu0.b32.cont [13/16] 0.0, 128
        %1141 = vxpose.xlu0.b32.cont [14/16] 0.0, 128
        %1142 = vxpose.xlu0.b32.cont [15/16] 0.0, 128
        %1143 = vxpose.xlu0.b32.end [16/16] 0.0, 128
        %v1144 = vpop.trf.xlu0
        %v1145 = vpop.trf.xlu0
        %v1146 = vpop.trf.xlu0
        %v1147 = vpop.trf.xlu0
        %v1148 = vpop.trf.xlu0
        %v1149 = vpop.trf.xlu0
        %v1150 = vpop.trf.xlu0
        %v1151 = vpop.trf.xlu0
        %v1152 = vpop.trf.xlu0
        %v1153 = vpop.trf.xlu0
        %v1154 = vpop.trf.xlu0
        %v1155 = vpop.trf.xlu0
        %v1156 = vpop.trf.xlu0
        %v1157 = vpop.trf.xlu0
        %v1158 = vpop.trf.xlu0
        %v1159 = vpop.trf.xlu0
        %1160 = vxpose.xlu0.b32.start [1/16] %v1113, 128
        %1161 = vxpose.xlu0.b32.cont [2/16] %v1117, 128
        %1162 = vxpose.xlu0.b32.cont [3/16] %v1121, 128
        %1163 = vxpose.xlu0.b32.cont [4/16] %v1125, 128
        %1164 = vxpose.xlu0.b32.cont [5/16] 0.0, 128
        %1165 = vxpose.xlu0.b32.cont [6/16] 0.0, 128
        %1166 = vxpose.xlu0.b32.cont [7/16] 0.0, 128
        %1167 = vxpose.xlu0.b32.cont [8/16] 0.0, 128
        %1168 = vxpose.xlu0.b32.cont [9/16] 0.0, 128
        %1169 = vxpose.xlu0.b32.cont [10/16] 0.0, 128
        %1170 = vxpose.xlu0.b32.cont [11/16] 0.0, 128
        %1171 = vxpose.xlu0.b32.cont [12/16] 0.0, 128
        %1172 = vxpose.xlu0.b32.cont [13/16] 0.0, 128
        %1173 = vxpose.xlu0.b32.cont [14/16] 0.0, 128
        %1174 = vxpose.xlu0.b32.cont [15/16] 0.0, 128
        %1175 = vxpose.xlu0.b32.end [16/16] 0.0, 128
        %v1176 = vpop.trf.xlu0
        %v1177 = vpop.trf.xlu0
        %v1178 = vpop.trf.xlu0
        %v1179 = vpop.trf.xlu0
        %v1180 = vpop.trf.xlu0
        %v1181 = vpop.trf.xlu0
        %v1182 = vpop.trf.xlu0
        %v1183 = vpop.trf.xlu0
        %v1184 = vpop.trf.xlu0
        %v1185 = vpop.trf.xlu0
        %v1186 = vpop.trf.xlu0
        %v1187 = vpop.trf.xlu0
        %v1188 = vpop.trf.xlu0
        %v1189 = vpop.trf.xlu0
        %v1190 = vpop.trf.xlu0
        %v1191 = vpop.trf.xlu0
        %1192 = vxpose.xlu0.b32.start [1/16] %v1114, 128
        %1193 = vxpose.xlu0.b32.cont [2/16] %v1118, 128
        %1194 = vxpose.xlu0.b32.cont [3/16] %v1122, 128
        %1195 = vxpose.xlu0.b32.cont [4/16] %v1126, 128
        %1196 = vxpose.xlu0.b32.cont [5/16] 0.0, 128
        %1197 = vxpose.xlu0.b32.cont [6/16] 0.0, 128
        %1198 = vxpose.xlu0.b32.cont [7/16] 0.0, 128
        %1199 = vxpose.xlu0.b32.cont [8/16] 0.0, 128
        %1200 = vxpose.xlu0.b32.cont [9/16] 0.0, 128
        %1201 = vxpose.xlu0.b32.cont [10/16] 0.0, 128
        %1202 = vxpose.xlu0.b32.cont [11/16] 0.0, 128
        %1203 = vxpose.xlu0.b32.cont [12/16] 0.0, 128
        %1204 = vxpose.xlu0.b32.cont [13/16] 0.0, 128
        %1205 = vxpose.xlu0.b32.cont [14/16] 0.0, 128
        %1206 = vxpose.xlu0.b32.cont [15/16] 0.0, 128
        %1207 = vxpose.xlu0.b32.end [16/16] 0.0, 128
        %v1208 = vpop.trf.xlu0
        %v1209 = vpop.trf.xlu0
        %v1210 = vpop.trf.xlu0
        %v1211 = vpop.trf.xlu0
        %v1212 = vpop.trf.xlu0
        %v1213 = vpop.trf.xlu0
        %v1214 = vpop.trf.xlu0
        %v1215 = vpop.trf.xlu0
        %v1216 = vpop.trf.xlu0
        %v1217 = vpop.trf.xlu0
        %v1218 = vpop.trf.xlu0
        %v1219 = vpop.trf.xlu0
        %v1220 = vpop.trf.xlu0
        %v1221 = vpop.trf.xlu0
        %v1222 = vpop.trf.xlu0
        %v1223 = vpop.trf.xlu0
        %1224 = vxpose.xlu0.b32.start [1/16] %v1115, 128
        %1225 = vxpose.xlu0.b32.cont [2/16] %v1119, 128
        %1226 = vxpose.xlu0.b32.cont [3/16] %v1123, 128
        %1227 = vxpose.xlu0.b32.cont [4/16] %v1127, 128
        %1228 = vxpose.xlu0.b32.cont [5/16] 0.0, 128
        %1229 = vxpose.xlu0.b32.cont [6/16] 0.0, 128
        %1230 = vxpose.xlu0.b32.cont [7/16] 0.0, 128
        %1231 = vxpose.xlu0.b32.cont [8/16] 0.0, 128
        %1232 = vxpose.xlu0.b32.cont [9/16] 0.0, 128
        %1233 = vxpose.xlu0.b32.cont [10/16] 0.0, 128
        %1234 = vxpose.xlu0.b32.cont [11/16] 0.0, 128
        %1235 = vxpose.xlu0.b32.cont [12/16] 0.0, 128
        %1236 = vxpose.xlu0.b32.cont [13/16] 0.0, 128
        %1237 = vxpose.xlu0.b32.cont [14/16] 0.0, 128
        %1238 = vxpose.xlu0.b32.cont [15/16] 0.0, 128
        %1239 = vxpose.xlu0.b32.end [16/16] 0.0, 128
        %v1240 = vpop.trf.xlu0
        %v1241 = vpop.trf.xlu0
        %v1242 = vpop.trf.xlu0
        %v1243 = vpop.trf.xlu0
        %v1244 = vpop.trf.xlu0
        %v1245 = vpop.trf.xlu0
        %v1246 = vpop.trf.xlu0
        %v1247 = vpop.trf.xlu0
        %v1248 = vpop.trf.xlu0
        %v1249 = vpop.trf.xlu0
        %v1250 = vpop.trf.xlu0
        %v1251 = vpop.trf.xlu0
        %v1252 = vpop.trf.xlu0
        %v1253 = vpop.trf.xlu0
        %v1254 = vpop.trf.xlu0
        %v1255 = vpop.trf.xlu0
        %v1256 = vld [vmem:[%s7] sm:$0xff]
        %v1257 = vld [vmem:[%s7 + $0x8] sm:$0xff]
        %v1258 = vld [vmem:[%s7 + $0x10] sm:$0xff]
        %v1259 = vld [vmem:[%s7 + $0x18] sm:$0xff]
        %v1260 = vld [vmem:[%s8] sm:$0x1]
        %v1262 = vperm.slane %v1260, 0
        %v1265 = vsel %vm811, %v1144, 0
        %v1268 = vsel %vm811, %v1145, 0
        %v1271 = vsel %vm811, %v1146, 0
        %v1274 = vsel %vm811, %v1147, 0
        %v1277 = vsel %vm811, %v1148, 0
        %v1280 = vsel %vm811, %v1149, 0
        %v1283 = vsel %vm811, %v1150, 0
        %v1286 = vsel %vm811, %v1151, 0
        %v1289 = vsel %vm811, %v1152, 0
        %v1292 = vsel %vm811, %v1153, 0
        %v1295 = vsel %vm811, %v1154, 0
        %v1298 = vsel %vm811, %v1155, 0
        %v1301 = vsel %vm811, %v1156, 0
        %v1304 = vsel %vm811, %v1157, 0
        %v1307 = vsel %vm811, %v1158, 0
        %v1310 = vsel %vm811, %v1159, 0
        %v1313 = vsel %vm811, %v1176, 0
        %v1316 = vsel %vm811, %v1177, 0
        %v1319 = vsel %vm811, %v1178, 0
        %v1322 = vsel %vm811, %v1179, 0
        %v1325 = vsel %vm811, %v1180, 0
        %v1328 = vsel %vm811, %v1181, 0
        %v1331 = vsel %vm811, %v1182, 0
        %v1334 = vsel %vm811, %v1183, 0
        %v1337 = vsel %vm811, %v1184, 0
        %v1340 = vsel %vm811, %v1185, 0
        %v1343 = vsel %vm811, %v1186, 0
        %v1346 = vsel %vm811, %v1187, 0
        %v1349 = vsel %vm811, %v1188, 0
        %v1352 = vsel %vm811, %v1189, 0
        %v1355 = vsel %vm811, %v1190, 0
        %v1358 = vsel %vm811, %v1191, 0
        %v1361 = vsel %vm811, %v1208, 0
        %v1364 = vsel %vm811, %v1209, 0
        %v1367 = vsel %vm811, %v1210, 0
        %v1370 = vsel %vm811, %v1211, 0
        %v1373 = vsel %vm811, %v1212, 0
        %v1376 = vsel %vm811, %v1213, 0
        %v1379 = vsel %vm811, %v1214, 0
        %v1382 = vsel %vm811, %v1215, 0
        %v1385 = vsel %vm811, %v1216, 0
        %v1388 = vsel %vm811, %v1217, 0
        %v1391 = vsel %vm811, %v1218, 0
        %v1394 = vsel %vm811, %v1219, 0
        %v1397 = vsel %vm811, %v1220, 0
        %v1400 = vsel %vm811, %v1221, 0
        %v1403 = vsel %vm811, %v1222, 0
        %v1406 = vsel %vm811, %v1223, 0
        %v1409 = vsel %vm811, %v1240, 0
        %v1412 = vsel %vm811, %v1241, 0
        %v1415 = vsel %vm811, %v1242, 0
        %v1418 = vsel %vm811, %v1243, 0
        %v1421 = vsel %vm811, %v1244, 0
        %v1424 = vsel %vm811, %v1245, 0
        %v1427 = vsel %vm811, %v1246, 0
        %v1430 = vsel %vm811, %v1247, 0
        %v1433 = vsel %vm811, %v1248, 0
        %v1436 = vsel %vm811, %v1249, 0
        %v1439 = vsel %vm811, %v1250, 0
        %v1442 = vsel %vm811, %v1251, 0
        %v1445 = vsel %vm811, %v1252, 0
        %v1448 = vsel %vm811, %v1253, 0
        %v1451 = vsel %vm811, %v1254, 0
        %v1454 = vsel %vm811, %v1255, 0
        %1456 = vmatpush.msra.mxu0 0.0
        %1457 = vmatpush.msra.mxu0 0.0
        %1458 = vmatpush.msra.mxu0 0.0
        %1459 = vmatpush.msra.mxu0 0.0
        %1460 = vmatpush.msra.mxu0 0.0
        %1461 = vmatpush.msra.mxu0 0.0
        %1462 = vmatpush.msra.mxu0 0.0
        %1463 = vmatpush.msra.mxu0 0.0
        %1464 = vmatpush.msra.mxu0 0.0
        %1465 = vmatpush.msra.mxu0 0.0
        %1466 = vmatpush.msra.mxu0 0.0
        %1467 = vmatpush.msra.mxu0 0.0
        %1468 = vmatpush.msra.mxu0 %v1259
        %1469 = vmatpush.msra.mxu0 %v1258
        %1470 = vmatpush.msra.mxu0 %v1257
        %1471 = vmatpush.msra.mxu0 %v1256
        %1472 = vmatmul.f32.gmra.mxu0 %v1265
        %v1473 = vpop.f32.mrf.mxu0
        %v1474 = vadd.f32 %v1262, %v1473
        %1475 = vmatmul.f32.gmra.mxu0 %v1268
        %v1476 = vpop.f32.mrf.mxu0
        %v1477 = vadd.f32 %v1262, %v1476
        %1478 = vmatmul.f32.gmra.mxu0 %v1271
        %v1479 = vpop.f32.mrf.mxu0
        %v1480 = vadd.f32 %v1262, %v1479
        %1481 = vmatmul.f32.gmra.mxu0 %v1274
        %v1482 = vpop.f32.mrf.mxu0
        %v1483 = vadd.f32 %v1262, %v1482
        %1484 = vmatmul.f32.gmra.mxu0 %v1277
        %v1485 = vpop.f32.mrf.mxu0
        %v1486 = vadd.f32 %v1262, %v1485
        %1487 = vmatmul.f32.gmra.mxu0 %v1280
        %v1488 = vpop.f32.mrf.mxu0
        %v1489 = vadd.f32 %v1262, %v1488
        %1490 = vmatmul.f32.gmra.mxu0 %v1283
        %v1491 = vpop.f32.mrf.mxu0
        %v1492 = vadd.f32 %v1262, %v1491
        %1493 = vmatmul.f32.gmra.mxu0 %v1286
        %v1494 = vpop.f32.mrf.mxu0
        %v1495 = vadd.f32 %v1262, %v1494
        %1496 = vmatmul.f32.gmra.mxu0 %v1289
        %v1497 = vpop.f32.mrf.mxu0
        %v1498 = vadd.f32 %v1262, %v1497
        %1499 = vmatmul.f32.gmra.mxu0 %v1292
        %v1500 = vpop.f32.mrf.mxu0
        %v1501 = vadd.f32 %v1262, %v1500
        %1502 = vmatmul.f32.gmra.mxu0 %v1295
        %v1503 = vpop.f32.mrf.mxu0
        %v1504 = vadd.f32 %v1262, %v1503
        %1505 = vmatmul.f32.gmra.mxu0 %v1298
        %v1506 = vpop.f32.mrf.mxu0
        %v1507 = vadd.f32 %v1262, %v1506
        %1508 = vmatmul.f32.gmra.mxu0 %v1301
        %v1509 = vpop.f32.mrf.mxu0
        %v1510 = vadd.f32 %v1262, %v1509
        %1511 = vmatmul.f32.gmra.mxu0 %v1304
        %v1512 = vpop.f32.mrf.mxu0
        %v1513 = vadd.f32 %v1262, %v1512
        %1514 = vmatmul.f32.gmra.mxu0 %v1307
        %v1515 = vpop.f32.mrf.mxu0
        %v1516 = vadd.f32 %v1262, %v1515
        %1517 = vmatmul.f32.gmra.mxu0 %v1310
        %v1518 = vpop.f32.mrf.mxu0
        %v1519 = vadd.f32 %v1262, %v1518
        %1520 = vmatmul.f32.gmra.mxu0 %v1313
        %v1521 = vpop.f32.mrf.mxu0
        %v1522 = vadd.f32 %v1262, %v1521
        %1523 = vmatmul.f32.gmra.mxu0 %v1316
        %v1524 = vpop.f32.mrf.mxu0
        %v1525 = vadd.f32 %v1262, %v1524
        %1526 = vmatmul.f32.gmra.mxu0 %v1319
        %v1527 = vpop.f32.mrf.mxu0
        %v1528 = vadd.f32 %v1262, %v1527
        %1529 = vmatmul.f32.gmra.mxu0 %v1322
        %v1530 = vpop.f32.mrf.mxu0
        %v1531 = vadd.f32 %v1262, %v1530
        %1532 = vmatmul.f32.gmra.mxu0 %v1325
        %v1533 = vpop.f32.mrf.mxu0
        %v1534 = vadd.f32 %v1262, %v1533
        %1535 = vmatmul.f32.gmra.mxu0 %v1328
        %v1536 = vpop.f32.mrf.mxu0
        %v1537 = vadd.f32 %v1262, %v1536
        %1538 = vmatmul.f32.gmra.mxu0 %v1331
        %v1539 = vpop.f32.mrf.mxu0
        %v1540 = vadd.f32 %v1262, %v1539
        %1541 = vmatmul.f32.gmra.mxu0 %v1334
        %v1542 = vpop.f32.mrf.mxu0
        %v1543 = vadd.f32 %v1262, %v1542
        %1544 = vmatmul.f32.gmra.mxu0 %v1337
        %v1545 = vpop.f32.mrf.mxu0
        %v1546 = vadd.f32 %v1262, %v1545
        %1547 = vmatmul.f32.gmra.mxu0 %v1340
        %v1548 = vpop.f32.mrf.mxu0
        %v1549 = vadd.f32 %v1262, %v1548
        %1550 = vmatmul.f32.gmra.mxu0 %v1343
        %v1551 = vpop.f32.mrf.mxu0
        %v1552 = vadd.f32 %v1262, %v1551
        %1553 = vmatmul.f32.gmra.mxu0 %v1346
        %v1554 = vpop.f32.mrf.mxu0
        %v1555 = vadd.f32 %v1262, %v1554
        %1556 = vmatmul.f32.gmra.mxu0 %v1349
        %v1557 = vpop.f32.mrf.mxu0
        %v1558 = vadd.f32 %v1262, %v1557
        %1559 = vmatmul.f32.gmra.mxu0 %v1352
        %v1560 = vpop.f32.mrf.mxu0
        %v1561 = vadd.f32 %v1262, %v1560
        %1562 = vmatmul.f32.gmra.mxu0 %v1355
        %v1563 = vpop.f32.mrf.mxu0
        %v1564 = vadd.f32 %v1262, %v1563
        %1565 = vmatmul.f32.gmra.mxu0 %v1358
        %v1566 = vpop.f32.mrf.mxu0
        %v1567 = vadd.f32 %v1262, %v1566
        %1568 = vmatmul.f32.gmra.mxu0 %v1361
        %v1569 = vpop.f32.mrf.mxu0
        %v1570 = vadd.f32 %v1262, %v1569
        %1571 = vmatmul.f32.gmra.mxu0 %v1364
        %v1572 = vpop.f32.mrf.mxu0
        %v1573 = vadd.f32 %v1262, %v1572
        %1574 = vmatmul.f32.gmra.mxu0 %v1367
        %v1575 = vpop.f32.mrf.mxu0
        %v1576 = vadd.f32 %v1262, %v1575
        %1577 = vmatmul.f32.gmra.mxu0 %v1370
        %v1578 = vpop.f32.mrf.mxu0
        %v1579 = vadd.f32 %v1262, %v1578
        %1580 = vmatmul.f32.gmra.mxu0 %v1373
        %v1581 = vpop.f32.mrf.mxu0
        %v1582 = vadd.f32 %v1262, %v1581
        %1583 = vmatmul.f32.gmra.mxu0 %v1376
        %v1584 = vpop.f32.mrf.mxu0
        %v1585 = vadd.f32 %v1262, %v1584
        %1586 = vmatmul.f32.gmra.mxu0 %v1379
        %v1587 = vpop.f32.mrf.mxu0
        %v1588 = vadd.f32 %v1262, %v1587
        %1589 = vmatmul.f32.gmra.mxu0 %v1382
        %v1590 = vpop.f32.mrf.mxu0
        %v1591 = vadd.f32 %v1262, %v1590
        %1592 = vmatmul.f32.gmra.mxu0 %v1385
        %v1593 = vpop.f32.mrf.mxu0
        %v1594 = vadd.f32 %v1262, %v1593
        %1595 = vmatmul.f32.gmra.mxu0 %v1388
        %v1596 = vpop.f32.mrf.mxu0
        %v1597 = vadd.f32 %v1262, %v1596
        %1598 = vmatmul.f32.gmra.mxu0 %v1391
        %v1599 = vpop.f32.mrf.mxu0
        %v1600 = vadd.f32 %v1262, %v1599
        %1601 = vmatmul.f32.gmra.mxu0 %v1394
        %v1602 = vpop.f32.mrf.mxu0
        %v1603 = vadd.f32 %v1262, %v1602
        %1604 = vmatmul.f32.gmra.mxu0 %v1397
        %v1605 = vpop.f32.mrf.mxu0
        %v1606 = vadd.f32 %v1262, %v1605
        %1607 = vmatmul.f32.gmra.mxu0 %v1400
        %v1608 = vpop.f32.mrf.mxu0
        %v1609 = vadd.f32 %v1262, %v1608
        %1610 = vmatmul.f32.gmra.mxu0 %v1403
        %v1611 = vpop.f32.mrf.mxu0
        %v1612 = vadd.f32 %v1262, %v1611
        %1613 = vmatmul.f32.gmra.mxu0 %v1406
        %v1614 = vpop.f32.mrf.mxu0
        %v1615 = vadd.f32 %v1262, %v1614
        %1616 = vmatmul.f32.gmra.mxu0 %v1409
        %v1617 = vpop.f32.mrf.mxu0
        %v1618 = vadd.f32 %v1262, %v1617
        %1619 = vmatmul.f32.gmra.mxu0 %v1412
        %v1620 = vpop.f32.mrf.mxu0
        %v1621 = vadd.f32 %v1262, %v1620
        %1622 = vmatmul.f32.gmra.mxu0 %v1415
        %v1623 = vpop.f32.mrf.mxu0
        %v1624 = vadd.f32 %v1262, %v1623
        %1625 = vmatmul.f32.gmra.mxu0 %v1418
        %v1626 = vpop.f32.mrf.mxu0
        %v1627 = vadd.f32 %v1262, %v1626
        %1628 = vmatmul.f32.gmra.mxu0 %v1421
        %v1629 = vpop.f32.mrf.mxu0
        %v1630 = vadd.f32 %v1262, %v1629
        %1631 = vmatmul.f32.gmra.mxu0 %v1424
        %v1632 = vpop.f32.mrf.mxu0
        %v1633 = vadd.f32 %v1262, %v1632
        %1634 = vmatmul.f32.gmra.mxu0 %v1427
        %v1635 = vpop.f32.mrf.mxu0
        %v1636 = vadd.f32 %v1262, %v1635
        %1637 = vmatmul.f32.gmra.mxu0 %v1430
        %v1638 = vpop.f32.mrf.mxu0
        %v1639 = vadd.f32 %v1262, %v1638
        %1640 = vmatmul.f32.gmra.mxu0 %v1433
        %v1641 = vpop.f32.mrf.mxu0
        %v1642 = vadd.f32 %v1262, %v1641
        %1643 = vmatmul.f32.gmra.mxu0 %v1436
        %v1644 = vpop.f32.mrf.mxu0
        %v1645 = vadd.f32 %v1262, %v1644
        %1646 = vmatmul.f32.gmra.mxu0 %v1439
        %v1647 = vpop.f32.mrf.mxu0
        %v1648 = vadd.f32 %v1262, %v1647
        %1649 = vmatmul.f32.gmra.mxu0 %v1442
        %v1650 = vpop.f32.mrf.mxu0
        %v1651 = vadd.f32 %v1262, %v1650
        %1652 = vmatmul.f32.gmra.mxu0 %v1445
        %v1653 = vpop.f32.mrf.mxu0
        %v1654 = vadd.f32 %v1262, %v1653
        %1655 = vmatmul.f32.gmra.mxu0 %v1448
        %v1656 = vpop.f32.mrf.mxu0
        %v1657 = vadd.f32 %v1262, %v1656
        %1658 = vmatmul.f32.gmra.mxu0 %v1451
        %v1659 = vpop.f32.mrf.mxu0
        %v1660 = vadd.f32 %v1262, %v1659
        %1661 = vmatmul.f32.gmra.mxu0 %v1454
        %v1662 = vpop.f32.mrf.mxu0
        %v1663 = vadd.f32 %v1262, %v1662
        %1664 = vdwg.mxu0
        %1665 = vst.msk [vmem:[%s334] sm:$0xff] %vm446, %v1474
        %1666 = vst.msk [vmem:[%s334 + $0x8] sm:$0xff] %vm446, %v1477
        %1667 = vst.msk [vmem:[%s334 + $0x10] sm:$0xff] %vm446, %v1480
        %1668 = vst.msk [vmem:[%s334 + $0x18] sm:$0xff] %vm446, %v1483
        %1669 = vst.msk [vmem:[%s334 + $0x20] sm:$0xff] %vm446, %v1486
        %1670 = vst.msk [vmem:[%s334 + $0x28] sm:$0xff] %vm446, %v1489
        %1671 = vst.msk [vmem:[%s334 + $0x30] sm:$0xff] %vm446, %v1492
        %1672 = vst.msk [vmem:[%s334 + $0x38] sm:$0xff] %vm446, %v1495
        %1673 = vst.msk [vmem:[%s334 + $0x40] sm:$0xff] %vm446, %v1498
        %1674 = vst.msk [vmem:[%s334 + $0x48] sm:$0xff] %vm446, %v1501
        %1675 = vst.msk [vmem:[%s334 + $0x50] sm:$0xff] %vm446, %v1504
        %1676 = vst.msk [vmem:[%s334 + $0x58] sm:$0xff] %vm446, %v1507
        %1677 = vst.msk [vmem:[%s334 + $0x60] sm:$0xff] %vm446, %v1510
        %1678 = vst.msk [vmem:[%s334 + $0x68] sm:$0xff] %vm446, %v1513
        %1679 = vst.msk [vmem:[%s334 + $0x70] sm:$0xff] %vm446, %v1516
        %1680 = vst.msk [vmem:[%s334 + $0x78] sm:$0xff] %vm446, %v1519
        %1681 = vst.msk [vmem:[%s334 + $0x80] sm:$0xff] %vm446, %v1522
        %1682 = vst.msk [vmem:[%s334 + $0x88] sm:$0xff] %vm446, %v1525
        %1683 = vst.msk [vmem:[%s334 + $0x90] sm:$0xff] %vm446, %v1528
        %1684 = vst.msk [vmem:[%s334 + $0x98] sm:$0xff] %vm446, %v1531
        %1685 = vst.msk [vmem:[%s334 + $0xa0] sm:$0xff] %vm446, %v1534
        %1686 = vst.msk [vmem:[%s334 + $0xa8] sm:$0xff] %vm446, %v1537
        %1687 = vst.msk [vmem:[%s334 + $0xb0] sm:$0xff] %vm446, %v1540
        %1688 = vst.msk [vmem:[%s334 + $0xb8] sm:$0xff] %vm446, %v1543
        %1689 = vst.msk [vmem:[%s334 + $0xc0] sm:$0xff] %vm446, %v1546
        %1690 = vst.msk [vmem:[%s334 + $0xc8] sm:$0xff] %vm446, %v1549
        %1691 = vst.msk [vmem:[%s334 + $0xd0] sm:$0xff] %vm446, %v1552
        %1692 = vst.msk [vmem:[%s334 + $0xd8] sm:$0xff] %vm446, %v1555
        %1693 = vst.msk [vmem:[%s334 + $0xe0] sm:$0xff] %vm446, %v1558
        %1694 = vst.msk [vmem:[%s334 + $0xe8] sm:$0xff] %vm446, %v1561
        %1695 = vst.msk [vmem:[%s334 + $0xf0] sm:$0xff] %vm446, %v1564
        %1696 = vst.msk [vmem:[%s334 + $0xf8] sm:$0xff] %vm446, %v1567
        %1697 = vst.msk [vmem:[%s334 + $0x100] sm:$0xff] %vm446, %v1570
        %1698 = vst.msk [vmem:[%s334 + $0x108] sm:$0xff] %vm446, %v1573
        %1699 = vst.msk [vmem:[%s334 + $0x110] sm:$0xff] %vm446, %v1576
        %1700 = vst.msk [vmem:[%s334 + $0x118] sm:$0xff] %vm446, %v1579
        %1701 = vst.msk [vmem:[%s334 + $0x120] sm:$0xff] %vm446, %v1582
        %1702 = vst.msk [vmem:[%s334 + $0x128] sm:$0xff] %vm446, %v1585
        %1703 = vst.msk [vmem:[%s334 + $0x130] sm:$0xff] %vm446, %v1588
        %1704 = vst.msk [vmem:[%s334 + $0x138] sm:$0xff] %vm446, %v1591
        %1705 = vst.msk [vmem:[%s334 + $0x140] sm:$0xff] %vm446, %v1594
        %1706 = vst.msk [vmem:[%s334 + $0x148] sm:$0xff] %vm446, %v1597
        %1707 = vst.msk [vmem:[%s334 + $0x150] sm:$0xff] %vm446, %v1600
        %1708 = vst.msk [vmem:[%s334 + $0x158] sm:$0xff] %vm446, %v1603
        %1709 = vst.msk [vmem:[%s334 + $0x160] sm:$0xff] %vm446, %v1606
        %1710 = vst.msk [vmem:[%s334 + $0x168] sm:$0xff] %vm446, %v1609
        %1711 = vst.msk [vmem:[%s334 + $0x170] sm:$0xff] %vm446, %v1612
        %1712 = vst.msk [vmem:[%s334 + $0x178] sm:$0xff] %vm446, %v1615
        %1713 = vst.msk [vmem:[%s334 + $0x180] sm:$0xff] %vm446, %v1618
        %1714 = vst.msk [vmem:[%s334 + $0x188] sm:$0xff] %vm446, %v1621
        %1715 = vst.msk [vmem:[%s334 + $0x190] sm:$0xff] %vm446, %v1624
        %1716 = vst.msk [vmem:[%s334 + $0x198] sm:$0xff] %vm446, %v1627
        %1717 = vst.msk [vmem:[%s334 + $0x1a0] sm:$0xff] %vm446, %v1630
        %1718 = vst.msk [vmem:[%s334 + $0x1a8] sm:$0xff] %vm446, %v1633
        %1719 = vst.msk [vmem:[%s334 + $0x1b0] sm:$0xff] %vm446, %v1636
        %1720 = vst.msk [vmem:[%s334 + $0x1b8] sm:$0xff] %vm446, %v1639
        %1721 = vst.msk [vmem:[%s334 + $0x1c0] sm:$0xff] %vm446, %v1642
        %1722 = vst.msk [vmem:[%s334 + $0x1c8] sm:$0xff] %vm446, %v1645
        %1723 = vst.msk [vmem:[%s334 + $0x1d0] sm:$0xff] %vm446, %v1648
        %1724 = vst.msk [vmem:[%s334 + $0x1d8] sm:$0xff] %vm446, %v1651
        %1725 = vst.msk [vmem:[%s334 + $0x1e0] sm:$0xff] %vm446, %v1654
        %1726 = vst.msk [vmem:[%s334 + $0x1e8] sm:$0xff] %vm446, %v1657
        %1727 = vst.msk [vmem:[%s334 + $0x1f0] sm:$0xff] %vm446, %v1660
        %1728 = vst.msk [vmem:[%s334 + $0x1f8] sm:$0xff] %vm446, %v1663
        %s1729 = sand.u32 %s222, 1
        %s1730 = sand.u32 %s222, 1
        %s1731 = smul.addr %s1730, 512
        %s1732 = scalar_lea.vmem [#allocation2], %s1731
        // Predicated region
        $region57: #{tpu_custom_call.1} parent=55 // pred_check
          %p1733 = pneg %p232
        $region58: #{tpu_custom_call.1} parent=55 // pred_check_branch
          %1735 = sbr.rel (%p1733) target = $region60
        $region59: #{tpu_custom_call.1} parent=55 // pred_region
          %s1736 = smul.u32 64, %s20
          %s1737 = ssub.s32 125, %s1736
          %p1738 = scmp.lt.s32.totalorder %s1737, 64
          %s1739 = scalar_select %p1738, %s1737, 64
          %s1740 = smul.u32 8, %s1739
          %p1741 = scmp.ne.s32.totalorder 0, %s1740
          %s1742 = smul.addr %s1736, 8
          %s1743 = scalar_lea.vmem %s9, %s1742
          // Predicated region
          $region61: #{tpu_custom_call.1} parent=59 // pred_check
            %p1744 = pneg %p1741
          $region62: #{tpu_custom_call.1} parent=59 // pred_check_branch
            %1746 = sbr.rel (%p1744) target = $region64
          $region63: #{tpu_custom_call.1} parent=59 // pred_region
            // Predicated region
            $region65: #{tpu_custom_call.1} parent=63 // pred_check
              _
            $region66: #{tpu_custom_call.1} parent=63 // pred_check_branch
              %1748 = sbr.rel (0) target = $region68
            $region67: #{tpu_custom_call.1} parent=63 // pred_region
              // Predicated region
              $region87: #{tpu_custom_call.1} parent=67 // pred_check
                _
              $region88: #{tpu_custom_call.1} parent=67 // pred_check_branch
                %1860 = sbr.rel (0) target = $region90
              $region89: #{tpu_custom_call.1} parent=67 // pred_region
                %s1861 = sshrl.u32 %s1739, 5
                // While loop
                $region91: #{tpu_custom_call.1} parent=89 // loop_pre_header
                  _
                $region92: #{tpu_custom_call.1} parent=89 // loop_header
                  %s1863 = sphi 0, %s1865
                  %p1864 = scmp.ge.s32.totalorder %s1863, %s1861
                  %s1868 = sphi 0, %s1937
                  %s1869 = sphi %s1732, %s1940
                  %s1870 = sphi %s1743, %s1941
                $region93: #{tpu_custom_call.1} parent=89 // loop_header_branch
                  %1867 = sbr.rel (%p1864) target = $region97
                $region94: #{tpu_custom_call.1} parent=89 // loop_body
                  %v1871 = vld [vmem:[%s1869] sm:$0xff]
                  %1872 = vst [vmem:[%s1870] sm:$0xff] %v1871
                  %v1873 = vld [vmem:[%s1869 + $0x8] sm:$0xff]
                  %1874 = vst [vmem:[%s1870 + $0x8] sm:$0xff] %v1873
                  %v1875 = vld [vmem:[%s1869 + $0x10] sm:$0xff]
                  %1876 = vst [vmem:[%s1870 + $0x10] sm:$0xff] %v1875
                  %v1877 = vld [vmem:[%s1869 + $0x18] sm:$0xff]
                  %1878 = vst [vmem:[%s1870 + $0x18] sm:$0xff] %v1877
                  %v1879 = vld [vmem:[%s1869 + $0x20] sm:$0xff]
                  %1880 = vst [vmem:[%s1870 + $0x20] sm:$0xff] %v1879
                  %v1881 = vld [vmem:[%s1869 + $0x28] sm:$0xff]
                  %1882 = vst [vmem:[%s1870 + $0x28] sm:$0xff] %v1881
                  %v1883 = vld [vmem:[%s1869 + $0x30] sm:$0xff]
                  %1884 = vst [vmem:[%s1870 + $0x30] sm:$0xff] %v1883
                  %v1885 = vld [vmem:[%s1869 + $0x38] sm:$0xff]
                  %1886 = vst [vmem:[%s1870 + $0x38] sm:$0xff] %v1885
                  %v1887 = vld [vmem:[%s1869 + $0x40] sm:$0xff]
                  %1888 = vst [vmem:[%s1870 + $0x40] sm:$0xff] %v1887
                  %v1889 = vld [vmem:[%s1869 + $0x48] sm:$0xff]
                  %1890 = vst [vmem:[%s1870 + $0x48] sm:$0xff] %v1889
                  %v1891 = vld [vmem:[%s1869 + $0x50] sm:$0xff]
                  %1892 = vst [vmem:[%s1870 + $0x50] sm:$0xff] %v1891
                  %v1893 = vld [vmem:[%s1869 + $0x58] sm:$0xff]
                  %1894 = vst [vmem:[%s1870 + $0x58] sm:$0xff] %v1893
                  %v1895 = vld [vmem:[%s1869 + $0x60] sm:$0xff]
                  %1896 = vst [vmem:[%s1870 + $0x60] sm:$0xff] %v1895
                  %v1897 = vld [vmem:[%s1869 + $0x68] sm:$0xff]
                  %1898 = vst [vmem:[%s1870 + $0x68] sm:$0xff] %v1897
                  %v1899 = vld [vmem:[%s1869 + $0x70] sm:$0xff]
                  %1900 = vst [vmem:[%s1870 + $0x70] sm:$0xff] %v1899
                  %v1901 = vld [vmem:[%s1869 + $0x78] sm:$0xff]
                  %1902 = vst [vmem:[%s1870 + $0x78] sm:$0xff] %v1901
                  %v1903 = vld [vmem:[%s1869 + $0x80] sm:$0xff]
                  %1904 = vst [vmem:[%s1870 + $0x80] sm:$0xff] %v1903
                  %v1905 = vld [vmem:[%s1869 + $0x88] sm:$0xff]
                  %1906 = vst [vmem:[%s1870 + $0x88] sm:$0xff] %v1905
                  %v1907 = vld [vmem:[%s1869 + $0x90] sm:$0xff]
                  %1908 = vst [vmem:[%s1870 + $0x90] sm:$0xff] %v1907
                  %v1909 = vld [vmem:[%s1869 + $0x98] sm:$0xff]
                  %1910 = vst [vmem:[%s1870 + $0x98] sm:$0xff] %v1909
                  %v1911 = vld [vmem:[%s1869 + $0xa0] sm:$0xff]
                  %1912 = vst [vmem:[%s1870 + $0xa0] sm:$0xff] %v1911
                  %v1913 = vld [vmem:[%s1869 + $0xa8] sm:$0xff]
                  %1914 = vst [vmem:[%s1870 + $0xa8] sm:$0xff] %v1913
                  %v1915 = vld [vmem:[%s1869 + $0xb0] sm:$0xff]
                  %1916 = vst [vmem:[%s1870 + $0xb0] sm:$0xff] %v1915
                  %v1917 = vld [vmem:[%s1869 + $0xb8] sm:$0xff]
                  %1918 = vst [vmem:[%s1870 + $0xb8] sm:$0xff] %v1917
                  %v1919 = vld [vmem:[%s1869 + $0xc0] sm:$0xff]
                  %1920 = vst [vmem:[%s1870 + $0xc0] sm:$0xff] %v1919
                  %v1921 = vld [vmem:[%s1869 + $0xc8] sm:$0xff]
                  %1922 = vst [vmem:[%s1870 + $0xc8] sm:$0xff] %v1921
                  %v1923 = vld [vmem:[%s1869 + $0xd0] sm:$0xff]
                  %1924 = vst [vmem:[%s1870 + $0xd0] sm:$0xff] %v1923
                  %v1925 = vld [vmem:[%s1869 + $0xd8] sm:$0xff]
                  %1926 = vst [vmem:[%s1870 + $0xd8] sm:$0xff] %v1925
                  %v1927 = vld [vmem:[%s1869 + $0xe0] sm:$0xff]
                  %1928 = vst [vmem:[%s1870 + $0xe0] sm:$0xff] %v1927
                  %v1929 = vld [vmem:[%s1869 + $0xe8] sm:$0xff]
                  %1930 = vst [vmem:[%s1870 + $0xe8] sm:$0xff] %v1929
                  %v1931 = vld [vmem:[%s1869 + $0xf0] sm:$0xff]
                  %1932 = vst [vmem:[%s1870 + $0xf0] sm:$0xff] %v1931
                  %v1933 = vld [vmem:[%s1869 + $0xf8] sm:$0xff]
                  %1934 = vst [vmem:[%s1870 + $0xf8] sm:$0xff] %v1933
                  %s1935 = sadd.s32 1, %s1868
                  %p1936 = scmp.ge.s32.totalorder %s1935, %s1861
                  %s1937 = scalar_select %p1936, 0, %s1935
                  %s1938 = smul.u32 %s1937, 256
                  %s1939 = smul.u32 %s1937, 256
                  %s1940 = scalar_lea.vmem %s1732, %s1938 [#allocation2]
                  %s1941 = scalar_lea.vmem %s1743, %s1939
                $region95: #{tpu_custom_call.1} parent=89 // loop_footer
                  %s1865 = sadd.s32 %s1863, 1
                $region96: #{tpu_custom_call.1} parent=89 // loop_footer_branch
                  %1862 = sbr.rel target = $region92
                $region97: #{tpu_custom_call.1} parent=89 // loop_exit
                  _
                %s1942 = sshrl.u32 %s1739, 5
                %s1943 = sand.u32 %s1739, 31
                %s1944 = smul.u32 %s1942, 32
                %s1945 = smul.u32 8, %s1944
                %s1946 = scalar_lea.vmem %s1732, %s1945 [#allocation2]
                %s1947 = smul.u32 8, %s1944
                %s1948 = scalar_lea.vmem %s1743, %s1947
                // While loop
                $region98: #{tpu_custom_call.1} parent=89 // loop_pre_header
                  _
                $region99: #{tpu_custom_call.1} parent=89 // loop_header
                  %s1950 = sphi 0, %s1952
                  %p1951 = scmp.ge.s32.totalorder %s1950, %s1943
                  %s1955 = sphi 0, %s1962
                  %s1956 = sphi %s1946, %s1965
                  %s1957 = sphi %s1948, %s1966
                $region100: #{tpu_custom_call.1} parent=89 // loop_header_branch
                  %1954 = sbr.rel (%p1951) target = $region104
                $region101: #{tpu_custom_call.1} parent=89 // loop_body
                  %v1958 = vld [vmem:[%s1956] sm:$0xff]
                  %1959 = vst [vmem:[%s1957] sm:$0xff] %v1958
                  %s1960 = sadd.s32 1, %s1955
                  %p1961 = scmp.ge.s32.totalorder %s1960, %s1943
                  %s1962 = scalar_select %p1961, 0, %s1960
                  %s1963 = smul.u32 %s1962, 8
                  %s1964 = smul.u32 %s1962, 8
                  %s1965 = scalar_lea.vmem %s1946, %s1963 [#allocation2]
                  %s1966 = scalar_lea.vmem %s1948, %s1964
                $region102: #{tpu_custom_call.1} parent=89 // loop_footer
                  %s1952 = sadd.s32 %s1950, 1
                $region103: #{tpu_custom_call.1} parent=89 // loop_footer_branch
                  %1949 = sbr.rel target = $region99
                $region104: #{tpu_custom_call.1} parent=89 // loop_exit
                  _
              $region90: #{tpu_custom_call.1} parent=67 // pred_fallthru
                _
              // Predicated region
              $region105: #{tpu_custom_call.1} parent=67 // pred_check
                _
              $region106: #{tpu_custom_call.1} parent=67 // pred_check_branch
                %1968 = sbr.rel target = $region108
              $region107: #{tpu_custom_call.1} parent=67 // pred_region
                _
              $region108: #{tpu_custom_call.1} parent=67 // pred_fallthru
                _
            $region68: #{tpu_custom_call.1} parent=63 // pred_fallthru
              _
            // Predicated region
            $region69: #{tpu_custom_call.1} parent=63 // pred_check
              _
            $region70: #{tpu_custom_call.1} parent=63 // pred_check_branch
              %1750 = sbr.rel target = $region72
            $region71: #{tpu_custom_call.1} parent=63 // pred_region
              %s1752 = ssub.s32 256, 1
              %s1753 = sshrl.u32 %s1739, 5
              // While loop
              $region73: #{tpu_custom_call.1} parent=71 // loop_pre_header
                _
              $region74: #{tpu_custom_call.1} parent=71 // loop_header
                %s1755 = sphi 0, %s1757
                %p1756 = scmp.ge.s32.totalorder %s1755, %s1753
                %s1760 = sphi 0, %s1829
                %s1761 = sphi %s1732, %s1832
                %s1762 = sphi %s1743, %s1833
              $region75: #{tpu_custom_call.1} parent=71 // loop_header_branch
                %1759 = sbr.rel (%p1756) target = $region79
              $region76: #{tpu_custom_call.1} parent=71 // loop_body
                %v1763 = vld [vmem:[%s1761] sm:%s1752]
                %1764 = vst [vmem:[%s1762] sm:%s1752] %v1763
                %v1765 = vld [vmem:[%s1761 + $0x8] sm:%s1752]
                %1766 = vst [vmem:[%s1762 + $0x8] sm:%s1752] %v1765
                %v1767 = vld [vmem:[%s1761 + $0x10] sm:%s1752]
                %1768 = vst [vmem:[%s1762 + $0x10] sm:%s1752] %v1767
                %v1769 = vld [vmem:[%s1761 + $0x18] sm:%s1752]
                %1770 = vst [vmem:[%s1762 + $0x18] sm:%s1752] %v1769
                %v1771 = vld [vmem:[%s1761 + $0x20] sm:%s1752]
                %1772 = vst [vmem:[%s1762 + $0x20] sm:%s1752] %v1771
                %v1773 = vld [vmem:[%s1761 + $0x28] sm:%s1752]
                %1774 = vst [vmem:[%s1762 + $0x28] sm:%s1752] %v1773
                %v1775 = vld [vmem:[%s1761 + $0x30] sm:%s1752]
                %1776 = vst [vmem:[%s1762 + $0x30] sm:%s1752] %v1775
                %v1777 = vld [vmem:[%s1761 + $0x38] sm:%s1752]
                %1778 = vst [vmem:[%s1762 + $0x38] sm:%s1752] %v1777
                %v1779 = vld [vmem:[%s1761 + $0x40] sm:%s1752]
                %1780 = vst [vmem:[%s1762 + $0x40] sm:%s1752] %v1779
                %v1781 = vld [vmem:[%s1761 + $0x48] sm:%s1752]
                %1782 = vst [vmem:[%s1762 + $0x48] sm:%s1752] %v1781
                %v1783 = vld [vmem:[%s1761 + $0x50] sm:%s1752]
                %1784 = vst [vmem:[%s1762 + $0x50] sm:%s1752] %v1783
                %v1785 = vld [vmem:[%s1761 + $0x58] sm:%s1752]
                %1786 = vst [vmem:[%s1762 + $0x58] sm:%s1752] %v1785
                %v1787 = vld [vmem:[%s1761 + $0x60] sm:%s1752]
                %1788 = vst [vmem:[%s1762 + $0x60] sm:%s1752] %v1787
                %v1789 = vld [vmem:[%s1761 + $0x68] sm:%s1752]
                %1790 = vst [vmem:[%s1762 + $0x68] sm:%s1752] %v1789
                %v1791 = vld [vmem:[%s1761 + $0x70] sm:%s1752]
                %1792 = vst [vmem:[%s1762 + $0x70] sm:%s1752] %v1791
                %v1793 = vld [vmem:[%s1761 + $0x78] sm:%s1752]
                %1794 = vst [vmem:[%s1762 + $0x78] sm:%s1752] %v1793
                %v1795 = vld [vmem:[%s1761 + $0x80] sm:%s1752]
                %1796 = vst [vmem:[%s1762 + $0x80] sm:%s1752] %v1795
                %v1797 = vld [vmem:[%s1761 + $0x88] sm:%s1752]
                %1798 = vst [vmem:[%s1762 + $0x88] sm:%s1752] %v1797
                %v1799 = vld [vmem:[%s1761 + $0x90] sm:%s1752]
                %1800 = vst [vmem:[%s1762 + $0x90] sm:%s1752] %v1799
                %v1801 = vld [vmem:[%s1761 + $0x98] sm:%s1752]
                %1802 = vst [vmem:[%s1762 + $0x98] sm:%s1752] %v1801
                %v1803 = vld [vmem:[%s1761 + $0xa0] sm:%s1752]
                %1804 = vst [vmem:[%s1762 + $0xa0] sm:%s1752] %v1803
                %v1805 = vld [vmem:[%s1761 + $0xa8] sm:%s1752]
                %1806 = vst [vmem:[%s1762 + $0xa8] sm:%s1752] %v1805
                %v1807 = vld [vmem:[%s1761 + $0xb0] sm:%s1752]
                %1808 = vst [vmem:[%s1762 + $0xb0] sm:%s1752] %v1807
                %v1809 = vld [vmem:[%s1761 + $0xb8] sm:%s1752]
                %1810 = vst [vmem:[%s1762 + $0xb8] sm:%s1752] %v1809
                %v1811 = vld [vmem:[%s1761 + $0xc0] sm:%s1752]
                %1812 = vst [vmem:[%s1762 + $0xc0] sm:%s1752] %v1811
                %v1813 = vld [vmem:[%s1761 + $0xc8] sm:%s1752]
                %1814 = vst [vmem:[%s1762 + $0xc8] sm:%s1752] %v1813
                %v1815 = vld [vmem:[%s1761 + $0xd0] sm:%s1752]
                %1816 = vst [vmem:[%s1762 + $0xd0] sm:%s1752] %v1815
                %v1817 = vld [vmem:[%s1761 + $0xd8] sm:%s1752]
                %1818 = vst [vmem:[%s1762 + $0xd8] sm:%s1752] %v1817
                %v1819 = vld [vmem:[%s1761 + $0xe0] sm:%s1752]
                %1820 = vst [vmem:[%s1762 + $0xe0] sm:%s1752] %v1819
                %v1821 = vld [vmem:[%s1761 + $0xe8] sm:%s1752]
                %1822 = vst [vmem:[%s1762 + $0xe8] sm:%s1752] %v1821
                %v1823 = vld [vmem:[%s1761 + $0xf0] sm:%s1752]
                %1824 = vst [vmem:[%s1762 + $0xf0] sm:%s1752] %v1823
                %v1825 = vld [vmem:[%s1761 + $0xf8] sm:%s1752]
                %1826 = vst [vmem:[%s1762 + $0xf8] sm:%s1752] %v1825
                %s1827 = sadd.s32 1, %s1760
                %p1828 = scmp.ge.s32.totalorder %s1827, %s1753
                %s1829 = scalar_select %p1828, 0, %s1827
                %s1830 = smul.u32 %s1829, 256
                %s1831 = smul.u32 %s1829, 256
                %s1832 = scalar_lea.vmem %s1732, %s1830 [#allocation2]
                %s1833 = scalar_lea.vmem %s1743, %s1831
              $region77: #{tpu_custom_call.1} parent=71 // loop_footer
                %s1757 = sadd.s32 %s1755, 1
              $region78: #{tpu_custom_call.1} parent=71 // loop_footer_branch
                %1754 = sbr.rel target = $region74
              $region79: #{tpu_custom_call.1} parent=71 // loop_exit
                _
              %s1834 = sshrl.u32 %s1739, 5
              %s1835 = sand.u32 %s1739, 31
              %s1836 = smul.u32 %s1834, 32
              %s1837 = smul.u32 8, %s1836
              %s1838 = scalar_lea.vmem %s1732, %s1837 [#allocation2]
              %s1839 = smul.u32 8, %s1836
              %s1840 = scalar_lea.vmem %s1743, %s1839
              // While loop
              $region80: #{tpu_custom_call.1} parent=71 // loop_pre_header
                _
              $region81: #{tpu_custom_call.1} parent=71 // loop_header
                %s1842 = sphi 0, %s1844
                %p1843 = scmp.ge.s32.totalorder %s1842, %s1835
                %s1847 = sphi 0, %s1854
                %s1848 = sphi %s1838, %s1857
                %s1849 = sphi %s1840, %s1858
              $region82: #{tpu_custom_call.1} parent=71 // loop_header_branch
                %1846 = sbr.rel (%p1843) target = $region86
              $region83: #{tpu_custom_call.1} parent=71 // loop_body
                %v1850 = vld [vmem:[%s1848] sm:%s1752]
                %1851 = vst [vmem:[%s1849] sm:%s1752] %v1850
                %s1852 = sadd.s32 1, %s1847
                %p1853 = scmp.ge.s32.totalorder %s1852, %s1835
                %s1854 = scalar_select %p1853, 0, %s1852
                %s1855 = smul.u32 %s1854, 8
                %s1856 = smul.u32 %s1854, 8
                %s1857 = scalar_lea.vmem %s1838, %s1855 [#allocation2]
                %s1858 = scalar_lea.vmem %s1840, %s1856
              $region84: #{tpu_custom_call.1} parent=71 // loop_footer
                %s1844 = sadd.s32 %s1842, 1
              $region85: #{tpu_custom_call.1} parent=71 // loop_footer_branch
                %1841 = sbr.rel target = $region81
              $region86: #{tpu_custom_call.1} parent=71 // loop_exit
                _
            $region72: #{tpu_custom_call.1} parent=63 // pred_fallthru
              _
          $region64: #{tpu_custom_call.1} parent=59 // pred_fallthru
            _
          %1969 = vnop
        $region60: #{tpu_custom_call.1} parent=55 // pred_fallthru
          _
      $region56: #{tpu_custom_call.1} parent=5 // pred_fallthru
        _
      %p1970 = scmp.le.s32.totalorder 2, %s15
      // Predicated region
      $region109: #{tpu_custom_call.1} parent=5 // pred_check
        %p1971 = pneg %p1970
      $region110: #{tpu_custom_call.1} parent=5 // pred_check_branch
        %1973 = sbr.rel (%p1971) target = $region112
      $region111: #{tpu_custom_call.1} parent=5 // pred_region
        %s1974 = ssub.s32 %s15, 2
        // Predicated region
        $region113: #{tpu_custom_call.1} parent=111 // pred_check
          %p1975 = pneg %p238
        $region114: #{tpu_custom_call.1} parent=111 // pred_check_branch
          %1977 = sbr.rel (%p1975) target = $region116
        $region115: #{tpu_custom_call.1} parent=111 // pred_region
          %s1978 = sand.u32 %s223, 1
          %s1979 = sand.u32 %s223, 1
          %s1980 = smul.addr %s1979, 512
          %s1981 = scalar_lea.vmem [#allocation2], %s1980
        $region116: #{tpu_custom_call.1} parent=111 // pred_fallthru
          _
      $region112: #{tpu_custom_call.1} parent=5 // pred_fallthru
        _
    $region6: #{tpu_custom_call.1} parent=1 // loop_footer
      %s19 = sadd.s32 1, %s15
    $region7: #{tpu_custom_call.1} parent=1 // loop_footer_branch
      %14 = sbr.rel target = $region3
    $region8: #{tpu_custom_call.1} parent=1 // loop_exit
      _

</llo_original>
